<compile_context>
chip_gen: v7x
topology: tpu7x:2x2x1
jax: 0.10.0
libtpu: 0.0.40
codegen_flags: <defaults>
</compile_context>

<pallas_src>
import functools

import jax
import jax.numpy as jnp
from jax.experimental import pallas as pl
from jax.experimental.pallas import tpu as pltpu


def _round_up(x, m):
    return ((x + m - 1) // m) * m


def _fused_feature_extractor_kernel(x_ref, a1_ref, b1_ref, a2_ref, b2_ref,
                                    o_ref, x1p_scr, x2p_scr, *, Nb, H, HP):
    """One grid step = Nb batch elements, both conv+BN+ReLU layers.

    Layout: activations are "width-folded" to (rows, W*C) 2-D tiles so every
    load/store is lane-dense.  The 3x3 conv is three MXU matmuls against
    banded weight matrices A[kh] of shape (W*Cin, W*Cout) that already encode
    the kw taps, the zero padding along W, and the BN scale.  The Nb elements
    are stacked along the row (M) dimension with stride HP >= H+2: rows e*HP
    and e*HP+H+1 are element e's zero H-halos, so one set of three shifted
    matmuls over the whole slab is valid for every element at once.  Rows
    with (row mod HP) >= H are inter-element padding whose matmul results are
    garbage; they are masked to zero (layer-1) or simply never written out
    (layer-2).

    x_ref   : (Nb, H, W*Cin)           lane-folded NHWC input block
    a1_ref  : (3, W*Cin,  W*Cout)      banded layer-1 weights (bf16 or f32)
    b1_ref  : (1, W*Cout)              layer-1 folded BN bias (f32)
    a2_ref  : (3, W*Cout, W*Cout)      banded layer-2 weights
    b2_ref  : (1, W*Cout)              layer-2 folded BN bias
    o_ref   : (Nb, H, W*Cout)          lane-dense output block
    x1p_scr : (Nb*HP + 2, W*Cin)  f32  padded layer-1 input slab (VMEM)
    x2p_scr : (Nb*HP + 2, W*Cout) f32  padded layer-2 input slab (VMEM)
    """
    M = Nb * HP                       # matmul M dimension (multiple of 8)
    cdt = a1_ref.dtype                # MXU operand dtype (bf16 or f32)

    def conv3(xp_scr, a_ref):
        # out[m] = sum_kh xp[m + kh] @ A[kh]   (kw taps + W-padding inside A)
        acc = jnp.dot(xp_scr[0:M, :].astype(cdt), a_ref[0],
                      preferred_element_type=jnp.float32)
        acc += jnp.dot(xp_scr[1:M + 1, :].astype(cdt), a_ref[1],
                       preferred_element_type=jnp.float32)
        acc += jnp.dot(xp_scr[2:M + 2, :].astype(cdt), a_ref[2],
                       preferred_element_type=jnp.float32)
        return acc

    # ---- Layer 1: place the Nb elements + their H-halos into the padded slab.
    # Only the 2 halo rows per element are zeroed; the interior is overwritten
    # and the unused gap rows (e*HP+H+2 .. (e+1)*HP-1, plus the 2 slab tail
    # rows) only feed masked garbage rows, so they may stay stale.
    zin = jnp.zeros((1, x1p_scr.shape[1]), dtype=x1p_scr.dtype)
    for e in range(Nb):
        base = e * HP
        x1p_scr[base:base + 1, :] = zin                    # top halo
        x1p_scr[base + 1:base + 1 + H, :] = x_ref[e]       # interior rows
        x1p_scr[base + H + 1:base + H + 2, :] = zin        # bottom halo

    acc1 = conv3(x1p_scr, a1_ref)                          # (M, W*Cout) f32

    # Valid-row mask: slab row m is element e = m // HP, output row h = m % HP
    # iff h < H; everything else is inter-element padding (garbage).
    ri = jax.lax.broadcasted_iota(jnp.int32, (M, 1), 0)
    invalid = (ri >= H) & (ri < HP)
    for e in range(1, Nb):
        invalid = invalid | ((ri >= e * HP + H) & (ri < (e + 1) * HP))

    y1 = jnp.where(invalid, 0.0,
                   jnp.maximum(acc1 + b1_ref[...], 0.0))   # folded BN bias + ReLU

    # ---- Layer 2: the intermediate stays in VMEM (never round-trips to HBM).
    # y1's masked rows already provide zeros at every inter-element halo
    # position, so only the two global halo rows need explicit zero stores.
    # NOTE: review suggested feeding layer 2 straight from vregs via
    # pltpu.roll(y1, +-1, axis=0); the ref-staged form below is kept for
    # lowering robustness (the extra VMEM traffic is small vs. the matmuls).
    zmid = jnp.zeros((1, x2p_scr.shape[1]), dtype=x2p_scr.dtype)
    x2p_scr[0:1, :] = zmid                                 # global top halo
    x2p_scr[1:M + 1, :] = y1                               # data + masked halos
    x2p_scr[M + 1:M + 2, :] = zmid                         # global bottom halo

    acc2 = conv3(x2p_scr, a2_ref)
    y2 = jnp.maximum(acc2 + b2_ref[...], 0.0)              # (M, W*Cout) f32

    # ---- Write the H valid rows of every element.  HP is a multiple of 8, so
    # these are tile-aligned value slices and each store is (H, W*Cout)
    # lane-dense (no reshape relayout, per review).
    for e in range(Nb):
        o_ref[e] = y2[e * HP:e * HP + H, :].astype(o_ref.dtype)


def feature_extractor_fused(x_folded, a1, b1, a2, b2):
    """x_folded: (N, H, W*Cin) f32; a*: (3, K, W*Cout) bf16/f32; b*: (1, W*Cout) f32."""
    N, H, WCin = x_folded.shape
    WCout = a1.shape[-1]

    HP = _round_up(H + 2, 8)          # per-element row stride inside the slab

    # Cap elements-per-step with a conservative VMEM budget (v7x has only
    # 64 MiB physical / 32 MiB default-scoped VMEM; in/out blocks are
    # double-buffered by the pipeline, scratch slabs are f32).
    per_elem_bytes = 4 * (HP * (WCin + WCout) + 2 * H * (WCin + WCout))
    max_nb = max(1, (8 << 20) // per_elem_bytes)

    # Keep >= 2 "parallel" grid steps when N >= 2 so both v7x TensorCores get
    # work; on v5e/v6e (1 TC) the extra step costs ~0.35 us of step overhead.
    steps = 2 if N >= 2 else 1
    steps = max(steps, pl.cdiv(N, max_nb))
    while N % steps:                  # need equal-size blocks along the batch
        steps += 1
    Nb = N // steps
    M = Nb * HP

    kernel = functools.partial(_fused_feature_extractor_kernel,
                               Nb=Nb, H=H, HP=HP)
    return pl.pallas_call(
        kernel,
        out_shape=jax.ShapeDtypeStruct((N, H, WCout), jnp.float32),
        grid_spec=pltpu.PrefetchScalarGridSpec(
            num_scalar_prefetch=0,
            grid=(steps,),
            in_specs=[
                pl.BlockSpec((Nb, H, WCin), lambda s: (s, 0, 0)),
                pl.BlockSpec((3, WCin, WCout), lambda s: (0, 0, 0)),
                pl.BlockSpec((1, WCout), lambda s: (0, 0)),
                pl.BlockSpec((3, WCout, WCout), lambda s: (0, 0, 0)),
                pl.BlockSpec((1, WCout), lambda s: (0, 0)),
            ],
            out_specs=pl.BlockSpec((Nb, H, WCout), lambda s: (s, 0, 0)),
            scratch_shapes=[
                pltpu.VMEM((M + 2, WCin), jnp.float32),
                pltpu.VMEM((M + 2, WCout), jnp.float32),
            ],
        ),
        compiler_params=pltpu.CompilerParams(
            dimension_semantics=("parallel",)),
    )(x_folded, a1, b1, a2, b2)


def make_params(key, in_channels, out_channels):
    """Deterministic synthetic conv + BN (eval mode) parameters."""
    kw, kg, kb, km, kv = jax.random.split(key, 5)
    w_oihw = 0.1 * jax.random.normal(
        kw, (out_channels, in_channels, 3, 3), dtype=jnp.float32)
    gamma = 1.0 + 0.1 * jax.random.normal(kg, (out_channels,), jnp.float32)
    beta = 0.1 * jax.random.normal(kb, (out_channels,), jnp.float32)
    rmean = 0.1 * jax.random.normal(km, (out_channels,), jnp.float32)
    rvar = jnp.abs(1.0 + 0.1 * jax.random.normal(kv, (out_channels,),
                                                 jnp.float32))
    eps = 1e-5
    scale = gamma / jnp.sqrt(rvar + eps)     # gamma / sqrt(var + eps)
    bias = beta - rmean * scale              # beta - mean * scale
    return w_oihw, scale, bias


def fold_params(w_oihw, scale, bias, W, dtype=jnp.float32):
    """Build the width-folded banded weight matrices + tiled bias.

      a[kh, wi*Cin+ci, wo*Cout+co] = w[co, ci, kh, wi-wo+1]*scale[co]
        inside the band (zero outside, which also implements the zero padding
        along W).
      b[0, wo*Cout+co] = bias[co]
    """
    cout, cin = w_oihw.shape[0], w_oihw.shape[1]
    w = w_oihw.astype(jnp.float32) * scale[:, None, None, None]   # fold BN scale
    kw = jnp.arange(W)[:, None] - jnp.arange(W)[None, :] + 1      # (W, W)
    valid = (kw >= 0) & (kw <= 2)
    kw_c = jnp.clip(kw, 0, 2)
    w_t = jnp.transpose(w, (2, 1, 3, 0))                          # (kh, ci, kw, co)
    taps = jnp.take(w_t, kw_c, axis=2)                            # (kh, ci, W, W, co)
    taps = jnp.where(valid[None, None, :, :, None], taps, 0.0)
    a = jnp.transpose(taps, (0, 2, 1, 3, 4)).reshape(3, W * cin, W * cout)
    b = jnp.tile(bias.astype(jnp.float32), W)[None, :]            # (1, W*cout)
    return a.astype(dtype), b


def feature_extractor(x_nchw, params1, params2, compute_dtype=jnp.bfloat16):
    """Pallas implementation of FeatureExtractor.forward (eval-mode BN).

    NOTE: the NCHW <-> lane-folded transposes here exist only to match the
    PyTorch NCHW interface for the demo; producers/consumers should use the
    (N, H, W*C) lane-folded layout directly via feature_extractor_fused to
    avoid two extra HBM passes.
    """
    N, Cin, H, W = x_nchw.shape
    Cout = params1[0].shape[0]
    a1, b1 = fold_params(*params1, W, dtype=compute_dtype)
    a2, b2 = fold_params(*params2, W, dtype=compute_dtype)
    x = jnp.transpose(x_nchw, (0, 2, 3, 1)).reshape(N, H, W * Cin)
    y = feature_extractor_fused(x, a1, b1, a2, b2)        # (N, H, W*Cout)
    return jnp.transpose(y.reshape(N, H, W, Cout), (0, 3, 1, 2))


def _reference(x_nchw, params1, params2):
    """Pure-JAX reference (lax conv) for the correctness check."""
    def block(x, p):
        w_oihw, scale, bias = p
        y = jax.lax.conv_general_dilated(
            x, w_oihw, window_strides=(1, 1), padding=((1, 1), (1, 1)),
            dimension_numbers=("NCHW", "OIHW", "NCHW"))
        y = y * scale[None, :, None, None] + bias[None, :, None, None]
        return jnp.maximum(y, 0.0)
    return block(block(x_nchw, params1), params2)


if __name__ == "__main__":
    key = jax.random.PRNGKey(0)
    kx, k1, k2 = jax.random.split(key, 3)

    # N=4 exercises Nb=2 elements per grid step (batched-M slab with
    # cross-element halos) while keeping 2 parallel steps for v7x.
    N, Cin, Cout, H, W = 4, 4, 8, 16, 16
    x = jax.random.normal(kx, (N, Cin, H, W), dtype=jnp.float32)

    params1 = make_params(k1, Cin, Cout)
    params2 = make_params(k2, Cout, Cout)

    ref = jax.block_until_ready(_reference(x, params1, params2))

    # f32 MXU operands: exact parity with the f32 reference.
    out32 = jax.block_until_ready(
        feature_extractor(x, params1, params2, compute_dtype=jnp.float32))
    assert out32.shape == (N, Cout, H, W)
    assert jnp.max(jnp.abs(out32 - ref)) < 1e-4

    # bf16 MXU operands (native rate on v5e/v6e/v7x), f32 accumulation.
    out16 = jax.block_until_ready(
        feature_extractor(x, params1, params2, compute_dtype=jnp.bfloat16))
    rel_err = jnp.max(jnp.abs(out16 - ref)) / (jnp.max(jnp.abs(ref)) + 1e-6)
    assert rel_err < 5e-2

    print("KERNEL_OK")
</pallas_src>

<mosaic_0001>
module attributes {stable_mosaic.version = 11 : i64} {
  func.func @_fused_feature_extractor_kernel(%arg0: i32, %arg1: memref<2x16x64xf32, #tpu.memory_space<vmem>>, %arg2: memref<3x64x128xf32, #tpu.memory_space<vmem>>, %arg3: memref<1x128xf32, #tpu.memory_space<vmem>>, %arg4: memref<3x128x128xf32, #tpu.memory_space<vmem>>, %arg5: memref<1x128xf32, #tpu.memory_space<vmem>>, %arg6: memref<2x16x128xf32, #tpu.memory_space<vmem>>, %arg7: memref<50x64xf32, #tpu.memory_space<vmem>>, %arg8: memref<50x128xf32, #tpu.memory_space<vmem>>) attributes {dimension_semantics = [#tpu.dimension_semantics<parallel>], iteration_bounds = array<i64: 2>, scalar_prefetch = 0 : i64, scratch_operands = 2 : i64, tpu.core_type = #tpu.core_type<tc>, window_params = [{transform_indices = @transform_0, window_bounds = array<i64: 2, 16, 64>}, {pipeline_mode = #tpu.pipeline_mode<synchronous>, transform_indices = @transform_1, window_bounds = array<i64: 3, 64, 128>}, {pipeline_mode = #tpu.pipeline_mode<synchronous>, transform_indices = @transform_2, window_bounds = array<i64: 1, 128>}, {pipeline_mode = #tpu.pipeline_mode<synchronous>, transform_indices = @transform_3, window_bounds = array<i64: 3, 128, 128>}, {pipeline_mode = #tpu.pipeline_mode<synchronous>, transform_indices = @transform_4, window_bounds = array<i64: 1, 128>}, {transform_indices = @transform_5, window_bounds = array<i64: 2, 16, 128>}]} {
    %cst = arith.constant 0.000000e+00 : f32
    %0 = vector.broadcast %cst : f32 to vector<1x64xf32>
    %c0 = arith.constant 0 : index
    %c0_0 = arith.constant 0 : index
    %1 = vector.load %arg7[%c0, %c0_0] : memref<50x64xf32, #tpu.memory_space<vmem>>, vector<1x64xf32>
    tpu.vector_store %arg7[%c0, %c0_0], %0 {strides = array<i32>} : memref<50x64xf32, #tpu.memory_space<vmem>>, vector<1x64xf32>,
    %c0_1 = arith.constant 0 : index
    %c0_2 = arith.constant 0 : index
    %c0_3 = arith.constant 0 : index
    %2 = vector.load %arg1[%c0_1, %c0_2, %c0_3] : memref<2x16x64xf32, #tpu.memory_space<vmem>>, vector<1x16x64xf32>
    %3 = vector.shape_cast %2 : vector<1x16x64xf32> to vector<16x64xf32>
    %c1 = arith.constant 1 : index
    %c0_4 = arith.constant 0 : index
    %4 = vector.load %arg7[%c1, %c0_4] : memref<50x64xf32, #tpu.memory_space<vmem>>, vector<16x64xf32>
    tpu.vector_store %arg7[%c1, %c0_4], %3 {strides = array<i32>} : memref<50x64xf32, #tpu.memory_space<vmem>>, vector<16x64xf32>,
    %c17 = arith.constant 17 : index
    %c0_5 = arith.constant 0 : index
    %5 = vector.load %arg7[%c17, %c0_5] : memref<50x64xf32, #tpu.memory_space<vmem>>, vector<1x64xf32>
    tpu.vector_store %arg7[%c17, %c0_5], %0 {strides = array<i32>} : memref<50x64xf32, #tpu.memory_space<vmem>>, vector<1x64xf32>,
    %c24 = arith.constant 24 : index
    %c0_6 = arith.constant 0 : index
    %6 = vector.load %arg7[%c24, %c0_6] : memref<50x64xf32, #tpu.memory_space<vmem>>, vector<1x64xf32>
    tpu.vector_store %arg7[%c24, %c0_6], %0 {strides = array<i32>} : memref<50x64xf32, #tpu.memory_space<vmem>>, vector<1x64xf32>,
    %c1_7 = arith.constant 1 : index
    %c0_8 = arith.constant 0 : index
    %c0_9 = arith.constant 0 : index
    %7 = vector.load %arg1[%c1_7, %c0_8, %c0_9] : memref<2x16x64xf32, #tpu.memory_space<vmem>>, vector<1x16x64xf32>
    %8 = vector.shape_cast %7 : vector<1x16x64xf32> to vector<16x64xf32>
    %c25 = arith.constant 25 : index
    %c0_10 = arith.constant 0 : index
    %9 = vector.load %arg7[%c25, %c0_10] : memref<50x64xf32, #tpu.memory_space<vmem>>, vector<16x64xf32>
    tpu.vector_store %arg7[%c25, %c0_10], %8 {strides = array<i32>} : memref<50x64xf32, #tpu.memory_space<vmem>>, vector<16x64xf32>,
    %c41 = arith.constant 41 : index
    %c0_11 = arith.constant 0 : index
    %10 = vector.load %arg7[%c41, %c0_11] : memref<50x64xf32, #tpu.memory_space<vmem>>, vector<1x64xf32>
    tpu.vector_store %arg7[%c41, %c0_11], %0 {strides = array<i32>} : memref<50x64xf32, #tpu.memory_space<vmem>>, vector<1x64xf32>,
    %c0_12 = arith.constant 0 : index
    %c0_13 = arith.constant 0 : index
    %11 = vector.load %arg7[%c0_12, %c0_13] : memref<50x64xf32, #tpu.memory_space<vmem>>, vector<48x64xf32>
    %c0_14 = arith.constant 0 : index
    %c0_15 = arith.constant 0 : index
    %c0_16 = arith.constant 0 : index
    %12 = vector.load %arg2[%c0_14, %c0_15, %c0_16] : memref<3x64x128xf32, #tpu.memory_space<vmem>>, vector<1x64x128xf32>
    %13 = vector.shape_cast %12 : vector<1x64x128xf32> to vector<64x128xf32>
    %cst_17 = arith.constant dense<0.000000e+00> : vector<48x128xf32>
    %14 = tpu.matmul %11, %13, %cst_17 {dimension_numbers = #tpu.dot_dimension_numbers<[1], [0], [0], [1], [0, 0, 1, 1], [], []>} : vector<48x64xf32>, vector<64x128xf32>, vector<48x128xf32> -> vector<48x128xf32>
    %c1_18 = arith.constant 1 : index
    %c0_19 = arith.constant 0 : index
    %15 = vector.load %arg7[%c1_18, %c0_19] : memref<50x64xf32, #tpu.memory_space<vmem>>, vector<48x64xf32>
    %c1_20 = arith.constant 1 : index
    %c0_21 = arith.constant 0 : index
    %c0_22 = arith.constant 0 : index
    %16 = vector.load %arg2[%c1_20, %c0_21, %c0_22] : memref<3x64x128xf32, #tpu.memory_space<vmem>>, vector<1x64x128xf32>
    %17 = vector.shape_cast %16 : vector<1x64x128xf32> to vector<64x128xf32>
    %cst_23 = arith.constant dense<0.000000e+00> : vector<48x128xf32>
    %18 = tpu.matmul %15, %17, %cst_23 {dimension_numbers = #tpu.dot_dimension_numbers<[1], [0], [0], [1], [0, 0, 1, 1], [], []>} : vector<48x64xf32>, vector<64x128xf32>, vector<48x128xf32> -> vector<48x128xf32>
    %19 = arith.addf %14, %18 : vector<48x128xf32>
    %c2 = arith.constant 2 : index
    %c0_24 = arith.constant 0 : index
    %20 = vector.load %arg7[%c2, %c0_24] : memref<50x64xf32, #tpu.memory_space<vmem>>, vector<48x64xf32>
    %c2_25 = arith.constant 2 : index
    %c0_26 = arith.constant 0 : index
    %c0_27 = arith.constant 0 : index
    %21 = vector.load %arg2[%c2_25, %c0_26, %c0_27] : memref<3x64x128xf32, #tpu.memory_space<vmem>>, vector<1x64x128xf32>
    %22 = vector.shape_cast %21 : vector<1x64x128xf32> to vector<64x128xf32>
    %cst_28 = arith.constant dense<0.000000e+00> : vector<48x128xf32>
    %23 = tpu.matmul %20, %22, %cst_28 {dimension_numbers = #tpu.dot_dimension_numbers<[1], [0], [0], [1], [0, 0, 1, 1], [], []>} : vector<48x64xf32>, vector<64x128xf32>, vector<48x128xf32> -> vector<48x128xf32>
    %24 = arith.addf %19, %23 : vector<48x128xf32>
    %25 = tpu.iota {dimensions = array<i32: 0>} : vector<48x1xi32>
    %c16_i32 = arith.constant 16 : i32
    %26 = vector.broadcast %c16_i32 : i32 to vector<48x1xi32>
    %27 = arith.cmpi sge, %25, %26 : vector<48x1xi32>
    %c24_i32 = arith.constant 24 : i32
    %28 = vector.broadcast %c24_i32 : i32 to vector<48x1xi32>
    %29 = arith.cmpi slt, %25, %28 : vector<48x1xi32>
    %30 = arith.andi %27, %29 : vector<48x1xi1>
    %c40_i32 = arith.constant 40 : i32
    %31 = vector.broadcast %c40_i32 : i32 to vector<48x1xi32>
    %32 = arith.cmpi sge, %25, %31 : vector<48x1xi32>
    %c48_i32 = arith.constant 48 : i32
    %33 = vector.broadcast %c48_i32 : i32 to vector<48x1xi32>
    %34 = arith.cmpi slt, %25, %33 : vector<48x1xi32>
    %35 = arith.andi %32, %34 : vector<48x1xi1>
    %36 = arith.ori %30, %35 : vector<48x1xi1>
    %c0_29 = arith.constant 0 : index
    %c0_30 = arith.constant 0 : index
    %37 = vector.load %arg3[%c0_29, %c0_30] : memref<1x128xf32, #tpu.memory_space<vmem>>, vector<1x128xf32>
    %38 = vector.broadcast %37 : vector<1x128xf32> to vector<48x128xf32>
    %39 = arith.addf %24, %38 : vector<48x128xf32>
    %cst_31 = arith.constant 0.000000e+00 : f32
    %40 = vector.broadcast %cst_31 : f32 to vector<48x128xf32>
    %41 = arith.maximumf %39, %40 : vector<48x128xf32>
    %cst_32 = arith.constant 0.000000e+00 : f32
    %42 = vector.shape_cast %36 : vector<48x1xi1> to vector<48x1xi1>
    %43 = vector.broadcast %42 : vector<48x1xi1> to vector<48x128xi1>
    %44 = vector.broadcast %cst_32 : f32 to vector<48x128xf32>
    %45 = arith.select %43, %44, %41 : vector<48x128xi1>, vector<48x128xf32>
    %cst_33 = arith.constant 0.000000e+00 : f32
    %46 = vector.broadcast %cst_33 : f32 to vector<1x128xf32>
    %c0_34 = arith.constant 0 : index
    %c0_35 = arith.constant 0 : index
    %47 = vector.load %arg8[%c0_34, %c0_35] : memref<50x128xf32, #tpu.memory_space<vmem>>, vector<1x128xf32>
    tpu.vector_store %arg8[%c0_34, %c0_35], %46 {strides = array<i32>} : memref<50x128xf32, #tpu.memory_space<vmem>>, vector<1x128xf32>,
    %c1_36 = arith.constant 1 : index
    %c0_37 = arith.constant 0 : index
    %48 = vector.load %arg8[%c1_36, %c0_37] : memref<50x128xf32, #tpu.memory_space<vmem>>, vector<48x128xf32>
    tpu.vector_store %arg8[%c1_36, %c0_37], %45 {strides = array<i32>} : memref<50x128xf32, #tpu.memory_space<vmem>>, vector<48x128xf32>,
    %c49 = arith.constant 49 : index
    %c0_38 = arith.constant 0 : index
    %49 = vector.load %arg8[%c49, %c0_38] : memref<50x128xf32, #tpu.memory_space<vmem>>, vector<1x128xf32>
    tpu.vector_store %arg8[%c49, %c0_38], %46 {strides = array<i32>} : memref<50x128xf32, #tpu.memory_space<vmem>>, vector<1x128xf32>,
    %c0_39 = arith.constant 0 : index
    %c0_40 = arith.constant 0 : index
    %50 = vector.load %arg8[%c0_39, %c0_40] : memref<50x128xf32, #tpu.memory_space<vmem>>, vector<48x128xf32>
    %c0_41 = arith.constant 0 : index
    %c0_42 = arith.constant 0 : index
    %c0_43 = arith.constant 0 : index
    %51 = vector.load %arg4[%c0_41, %c0_42, %c0_43] : memref<3x128x128xf32, #tpu.memory_space<vmem>>, vector<1x128x128xf32>
    %52 = vector.shape_cast %51 : vector<1x128x128xf32> to vector<128x128xf32>
    %cst_44 = arith.constant dense<0.000000e+00> : vector<48x128xf32>
    %53 = tpu.matmul %50, %52, %cst_44 {dimension_numbers = #tpu.dot_dimension_numbers<[1], [0], [0], [1], [0, 0, 1, 1], [], []>} : vector<48x128xf32>, vector<128x128xf32>, vector<48x128xf32> -> vector<48x128xf32>
    %c1_45 = arith.constant 1 : index
    %c0_46 = arith.constant 0 : index
    %54 = vector.load %arg8[%c1_45, %c0_46] : memref<50x128xf32, #tpu.memory_space<vmem>>, vector<48x128xf32>
    %c1_47 = arith.constant 1 : index
    %c0_48 = arith.constant 0 : index
    %c0_49 = arith.constant 0 : index
    %55 = vector.load %arg4[%c1_47, %c0_48, %c0_49] : memref<3x128x128xf32, #tpu.memory_space<vmem>>, vector<1x128x128xf32>
    %56 = vector.shape_cast %55 : vector<1x128x128xf32> to vector<128x128xf32>
    %cst_50 = arith.constant dense<0.000000e+00> : vector<48x128xf32>
    %57 = tpu.matmul %54, %56, %cst_50 {dimension_numbers = #tpu.dot_dimension_numbers<[1], [0], [0], [1], [0, 0, 1, 1], [], []>} : vector<48x128xf32>, vector<128x128xf32>, vector<48x128xf32> -> vector<48x128xf32>
    %58 = arith.addf %53, %57 : vector<48x128xf32>
    %c2_51 = arith.constant 2 : index
    %c0_52 = arith.constant 0 : index
    %59 = vector.load %arg8[%c2_51, %c0_52] : memref<50x128xf32, #tpu.memory_space<vmem>>, vector<48x128xf32>
    %c2_53 = arith.constant 2 : index
    %c0_54 = arith.constant 0 : index
    %c0_55 = arith.constant 0 : index
    %60 = vector.load %arg4[%c2_53, %c0_54, %c0_55] : memref<3x128x128xf32, #tpu.memory_space<vmem>>, vector<1x128x128xf32>
    %61 = vector.shape_cast %60 : vector<1x128x128xf32> to vector<128x128xf32>
    %cst_56 = arith.constant dense<0.000000e+00> : vector<48x128xf32>
    %62 = tpu.matmul %59, %61, %cst_56 {dimension_numbers = #tpu.dot_dimension_numbers<[1], [0], [0], [1], [0, 0, 1, 1], [], []>} : vector<48x128xf32>, vector<128x128xf32>, vector<48x128xf32> -> vector<48x128xf32>
    %63 = arith.addf %58, %62 : vector<48x128xf32>
    %c0_57 = arith.constant 0 : index
    %c0_58 = arith.constant 0 : index
    %64 = vector.load %arg5[%c0_57, %c0_58] : memref<1x128xf32, #tpu.memory_space<vmem>>, vector<1x128xf32>
    %65 = vector.broadcast %64 : vector<1x128xf32> to vector<48x128xf32>
    %66 = arith.addf %63, %65 : vector<48x128xf32>
    %cst_59 = arith.constant 0.000000e+00 : f32
    %67 = vector.broadcast %cst_59 : f32 to vector<48x128xf32>
    %68 = arith.maximumf %66, %67 : vector<48x128xf32>
    %69 = vector.extract_strided_slice %68 {offsets = [0, 0], sizes = [16, 128], strides = [1, 1]} : vector<48x128xf32> to vector<16x128xf32>
    %c0_60 = arith.constant 0 : index
    %c0_61 = arith.constant 0 : index
    %c0_62 = arith.constant 0 : index
    %70 = vector.load %arg6[%c0_60, %c0_61, %c0_62] : memref<2x16x128xf32, #tpu.memory_space<vmem>>, vector<1x16x128xf32>
    %71 = vector.shape_cast %70 : vector<1x16x128xf32> to vector<16x128xf32>
    %72 = vector.shape_cast %69 : vector<16x128xf32> to vector<1x16x128xf32>
    tpu.vector_store %arg6[%c0_60, %c0_61, %c0_62], %72 {strides = array<i32>} : memref<2x16x128xf32, #tpu.memory_space<vmem>>, vector<1x16x128xf32>,
    %73 = vector.extract_strided_slice %68 {offsets = [24, 0], sizes = [16, 128], strides = [1, 1]} : vector<48x128xf32> to vector<16x128xf32>
    %c1_63 = arith.constant 1 : index
    %c0_64 = arith.constant 0 : index
    %c0_65 = arith.constant 0 : index
    %74 = vector.load %arg6[%c1_63, %c0_64, %c0_65] : memref<2x16x128xf32, #tpu.memory_space<vmem>>, vector<1x16x128xf32>
    %75 = vector.shape_cast %74 : vector<1x16x128xf32> to vector<16x128xf32>
    %76 = vector.shape_cast %73 : vector<16x128xf32> to vector<1x16x128xf32>
    tpu.vector_store %arg6[%c1_63, %c0_64, %c0_65], %76 {strides = array<i32>} : memref<2x16x128xf32, #tpu.memory_space<vmem>>, vector<1x16x128xf32>,
    return
  }
  func.func @transform_0(%arg0: i32) -> (i32, i32, i32) {
    %c0_i32 = arith.constant 0 : i32
    %c0_i32_0 = arith.constant 0 : i32
    %c0_i32_1 = arith.constant 0 : i32
    return %arg0, %c0_i32, %c0_i32_0 : i32, i32, i32
  }
  func.func @transform_1(%arg0: i32) -> (i32, i32, i32) {
    %c0_i32 = arith.constant 0 : i32
    %c0_i32_0 = arith.constant 0 : i32
    %c0_i32_1 = arith.constant 0 : i32
    %c0_i32_2 = arith.constant 0 : i32
    return %c0_i32, %c0_i32_0, %c0_i32_1 : i32, i32, i32
  }
  func.func @transform_2(%arg0: i32) -> (i32, i32) {
    %c0_i32 = arith.constant 0 : i32
    %c0_i32_0 = arith.constant 0 : i32
    %c0_i32_1 = arith.constant 0 : i32
    return %c0_i32, %c0_i32_0 : i32, i32
  }
  func.func @transform_3(%arg0: i32) -> (i32, i32, i32) {
    %c0_i32 = arith.constant 0 : i32
    %c0_i32_0 = arith.constant 0 : i32
    %c0_i32_1 = arith.constant 0 : i32
    %c0_i32_2 = arith.constant 0 : i32
    return %c0_i32, %c0_i32_0, %c0_i32_1 : i32, i32, i32
  }
  func.func @transform_4(%arg0: i32) -> (i32, i32) {
    %c0_i32 = arith.constant 0 : i32
    %c0_i32_0 = arith.constant 0 : i32
    %c0_i32_1 = arith.constant 0 : i32
    return %c0_i32, %c0_i32_0 : i32, i32
  }
  func.func @transform_5(%arg0: i32) -> (i32, i32, i32) {
    %c0_i32 = arith.constant 0 : i32
    %c0_i32_0 = arith.constant 0 : i32
    %c0_i32_1 = arith.constant 0 : i32
    return %arg0, %c0_i32, %c0_i32_0 : i32, i32, i32
  }
}

</mosaic_0001>

<llo_original>
// kernel: tpu_custom_call.1
$region0: #{tpu_custom_call.1}
  #allocation0 [shape = 'u32[]', space=smem, size = 0x4, offset = 0x4, fixed_abs, tag = 'smem constant byte address 0x4 - core index']
  #allocation1 [shape = 'u32[144,128]{1,0:T(1,128)}', space=vmem, size = 0x12000, scoped, tag = 'internal scratch']
  #allocation2 [shape = 'f32[50,64]{1,0:T(8,128)}', space=vmem, size = 0x7000, scoped, tag = 'scratch operand']
  #allocation3 [shape = 'f32[50,128]{1,0:T(8,128)}', space=vmem, size = 0x7000, scoped, tag = 'scratch operand']
  %s0 = inlined_call_operand.hbm [shape: f32[4,16,64], index: 0, kind: input, shape index: {}]
  %s1 = inlined_call_operand.hbm [shape: f32[3,64,128], index: 1, kind: input, shape index: {}]
  %s2 = inlined_call_operand.vmem [shape: f32[1,128], index: 2, kind: input, shape index: {}]
  %s3 = inlined_call_operand.hbm [shape: f32[3,128,128], index: 3, kind: input, shape index: {}]
  %s4 = inlined_call_operand.vmem [shape: f32[1,128], index: 4, kind: input, shape index: {}]
  %s5 = inlined_call_operand.hbm [shape: f32[4,16,128], index: 5, kind: output, shape index: {}]
  %s6 = sld [smem:[#allocation0]]
  $region65: #{tpu_custom_call.1} parent=0
    _
  %s8 = ssub.s32 1, %s6
  %s9 = scalar_select 0, %s8, %s6
  $region1: #{tpu_custom_call.1} parent=0
    #allocation4 [shape = 'u8[32768]{0}', space=vmem, size = 0x8000, scoped, tag = 'input window, operand 0']
    #allocation5 [shape = 's32[2]{0}', space=sflag, size = 0x8, scoped, tag = 'scoped memory for tpu_custom_call.1']
    #allocation6 [shape = 's32[2]{0}', space=sflag, size = 0x8, scoped, tag = 'scoped memory for tpu_custom_call.1']
    #allocation7 [shape = 'u8[98304]{0}', space=vmem, size = 0x18000, scoped, tag = 'input window, operand 1, single buffered']
    #allocation8 [shape = 's32[1]{0}', space=sflag, size = 0x4, scoped, tag = 'scoped memory for tpu_custom_call.1']
    #allocation9 [shape = 'u8[196608]{0}', space=vmem, size = 0x30000, scoped, tag = 'input window, operand 3, single buffered']
    #allocation10 [shape = 'u8[32768]{0}', space=vmem, size = 0x8000, scoped, tag = 'output window, operand 0']
    %10 = vsyncpa [#allocation5], 0
    %s11 = scalar_lea.sflag [#allocation5], 1
    %12 = vsyncpa %s11, 0
    %13 = vsyncpa [#allocation8], 0
    %14 = vsyncpa [#allocation6], 0
    %s15 = scalar_lea.sflag [#allocation6], 1
    %16 = vsyncpa %s15, 0
    loop: start=0, step=1, limit=4
    $region2: #{tpu_custom_call.1} parent=1 // loop_pre_header
      _
    $region3: #{tpu_custom_call.1} parent=1 // loop_header
      %s18 = sphi 0, %s22
      %p19 = scmp.ge.s32.totalorder %s18, 4
      %s28 = sphi 0, %s30
      %s31 = sphi 0, %s28
      %s32 = sphi 0, %s31
      %s48 = sphi 0, %s32
      %s52 = sphi 0, %s52
      %s54 = sphi 0, %s52
      %s55 = sphi 0, %s54
      %s69 = sphi 0, %s55
      %s73 = sphi 0, %s73
      %s75 = sphi 0, %s73
      %s76 = sphi 0, %s75
      %s90 = sphi 0, %s76
      %s94 = sphi 0, %s94
      %s96 = sphi 0, %s94
      %s97 = sphi 0, %s96
      %s111 = sphi 0, %s97
      %s115 = sphi 0, %s115
      %s117 = sphi 0, %s115
      %s118 = sphi 0, %s117
      %s132 = sphi 0, %s118
      %s138 = sphi 0, %s140
      %s141 = sphi 0, %s138
      %s142 = sphi 0, %s141
      %s158 = sphi 0, %s142
    $region4: #{tpu_custom_call.1} parent=1 // loop_header_branch
      %21 = sbr.rel (%p19) target = $region8
    $region5: #{tpu_custom_call.1} parent=1 // loop_body
      %s23 = ssub.s32 %s18, 1
      %s24 = ssub.s32 %s18, 2
      %s25 = sadd.s32 %s18, 1
      %s26 = ssub.s32 %s18, %s25
      %p27 = scmp.eq.s32.totalorder %s26, 0
      %s29 = sadd.s32 %s28, 1
      %s30 = scalar_select %p27, %s28, %s29
      %p33 = pneg %p27
      %p34 = scmp.eq.s32.totalorder %s18, 1
      %p35 = por %p33, %p34
      %p36 = scmp.ne.s32.totalorder %s28, %s31
      %p37 = scmp.eq.s32.totalorder %s18, 0
      %p38 = por %p36, %p37
      %p39 = scmp.ne.s32.totalorder %s28, %s31
      %p40 = scmp.eq.s32.totalorder %s23, 1
      %p41 = por %p39, %p40
      %p42 = scmp.ne.s32.totalorder %s31, %s32
      %p43 = scmp.eq.s32.totalorder %s23, 0
      %p44 = por %p42, %p43
      %p45 = scmp.ne.s32.totalorder %s31, %s32
      %p46 = scmp.eq.s32.totalorder %s24, 1
      %p47 = por %p45, %p46
      %p49 = scmp.ne.s32.totalorder %s32, %s48
      %p50 = scmp.eq.s32.totalorder %s24, 0
      %p51 = por %p49, %p50
      %s53 = sadd.s32 %s52, 1
      %p56 = scmp.eq.s32.totalorder %s18, 1
      %p57 = scmp.ne.s32.totalorder %s52, %s54
      %p58 = scmp.eq.s32.totalorder %s18, 0
      %p59 = por %p57, %p58
      %p60 = scmp.ne.s32.totalorder %s52, %s54
      %p61 = scmp.eq.s32.totalorder %s23, 1
      %p62 = por %p60, %p61
      %p63 = scmp.ne.s32.totalorder %s54, %s55
      %p64 = scmp.eq.s32.totalorder %s23, 0
      %p65 = por %p63, %p64
      %p66 = scmp.ne.s32.totalorder %s54, %s55
      %p67 = scmp.eq.s32.totalorder %s24, 1
      %p68 = por %p66, %p67
      %p70 = scmp.ne.s32.totalorder %s55, %s69
      %p71 = scmp.eq.s32.totalorder %s24, 0
      %p72 = por %p70, %p71
      %s74 = sadd.s32 %s73, 1
      %p77 = scmp.eq.s32.totalorder %s18, 1
      %p78 = scmp.ne.s32.totalorder %s73, %s75
      %p79 = scmp.eq.s32.totalorder %s18, 0
      %p80 = por %p78, %p79
      %p81 = scmp.ne.s32.totalorder %s73, %s75
      %p82 = scmp.eq.s32.totalorder %s23, 1
      %p83 = por %p81, %p82
      %p84 = scmp.ne.s32.totalorder %s75, %s76
      %p85 = scmp.eq.s32.totalorder %s23, 0
      %p86 = por %p84, %p85
      %p87 = scmp.ne.s32.totalorder %s75, %s76
      %p88 = scmp.eq.s32.totalorder %s24, 1
      %p89 = por %p87, %p88
      %p91 = scmp.ne.s32.totalorder %s76, %s90
      %p92 = scmp.eq.s32.totalorder %s24, 0
      %p93 = por %p91, %p92
      %s95 = sadd.s32 %s94, 1
      %p98 = scmp.eq.s32.totalorder %s18, 1
      %p99 = scmp.ne.s32.totalorder %s94, %s96
      %p100 = scmp.eq.s32.totalorder %s18, 0
      %p101 = por %p99, %p100
      %p102 = scmp.ne.s32.totalorder %s94, %s96
      %p103 = scmp.eq.s32.totalorder %s23, 1
      %p104 = por %p102, %p103
      %p105 = scmp.ne.s32.totalorder %s96, %s97
      %p106 = scmp.eq.s32.totalorder %s23, 0
      %p107 = por %p105, %p106
      %p108 = scmp.ne.s32.totalorder %s96, %s97
      %p109 = scmp.eq.s32.totalorder %s24, 1
      %p110 = por %p108, %p109
      %p112 = scmp.ne.s32.totalorder %s97, %s111
      %p113 = scmp.eq.s32.totalorder %s24, 0
      %p114 = por %p112, %p113
      %s116 = sadd.s32 %s115, 1
      %p119 = scmp.eq.s32.totalorder %s18, 1
      %p120 = scmp.ne.s32.totalorder %s115, %s117
      %p121 = scmp.eq.s32.totalorder %s18, 0
      %p122 = por %p120, %p121
      %p123 = scmp.ne.s32.totalorder %s115, %s117
      %p124 = scmp.eq.s32.totalorder %s23, 1
      %p125 = por %p123, %p124
      %p126 = scmp.ne.s32.totalorder %s117, %s118
      %p127 = scmp.eq.s32.totalorder %s23, 0
      %p128 = por %p126, %p127
      %p129 = scmp.ne.s32.totalorder %s117, %s118
      %p130 = scmp.eq.s32.totalorder %s24, 1
      %p131 = por %p129, %p130
      %p133 = scmp.ne.s32.totalorder %s118, %s132
      %p134 = scmp.eq.s32.totalorder %s24, 0
      %p135 = por %p133, %p134
      %s136 = ssub.s32 %s18, %s25
      %p137 = scmp.eq.s32.totalorder %s136, 0
      %s139 = sadd.s32 %s138, 1
      %s140 = scalar_select %p137, %s138, %s139
      %p143 = pneg %p137
      %p144 = scmp.eq.s32.totalorder %s18, 1
      %p145 = por %p143, %p144
      %p146 = scmp.ne.s32.totalorder %s138, %s141
      %p147 = scmp.eq.s32.totalorder %s18, 0
      %p148 = por %p146, %p147
      %p149 = scmp.ne.s32.totalorder %s138, %s141
      %p150 = scmp.eq.s32.totalorder %s23, 1
      %p151 = por %p149, %p150
      %p152 = scmp.ne.s32.totalorder %s141, %s142
      %p153 = scmp.eq.s32.totalorder %s23, 0
      %p154 = por %p152, %p153
      %p155 = scmp.ne.s32.totalorder %s141, %s142
      %p156 = scmp.eq.s32.totalorder %s24, 1
      %p157 = por %p155, %p156
      %p159 = scmp.ne.s32.totalorder %s142, %s158
      %p160 = scmp.eq.s32.totalorder %s24, 0
      %p161 = por %p159, %p160
      %p162 = scmp.le.s32.totalorder 1, %s18
      %p163 = scmp.lt.s32.totalorder %s18, 3
      %p164 = pnand %p162, %p163
      %p165 = pneg %p164
      // Predicated region
      $region9: #{tpu_custom_call.1} parent=5 // pred_check
        _
      $region10: #{tpu_custom_call.1} parent=5 // pred_check_branch
        %167 = sbr.rel (%p164) target = $region12
      $region11: #{tpu_custom_call.1} parent=5 // pred_region
        %s168 = ssub.s32 %s18, 1
        // Predicated region
        $region13: #{tpu_custom_call.1} parent=11 // pred_check
          %p169 = pneg %p65
        $region14: #{tpu_custom_call.1} parent=11 // pred_check_branch
          %171 = sbr.rel (%p169) target = $region16
        $region15: #{tpu_custom_call.1} parent=11 // pred_region
          %s173 = ssub.s32 3072, 3072
          %174 = vsyncadd [#allocation8], %s173
          %s175 = sshll.u32 [#allocation7], 4
          %s176 = int_to_ptr.vmem [resolvable:$true] %s175
          %181 = dma.hbm_to_vmem [thread:$0]  %s1, 3072, %s176, [#allocation8], 128, 128, 8
        $region16: #{tpu_custom_call.1} parent=11 // pred_fallthru
          _
        // Predicated region
        $region17: #{tpu_custom_call.1} parent=11 // pred_check
          %p182 = pneg %p86
        $region18: #{tpu_custom_call.1} parent=11 // pred_check_branch
          %184 = sbr.rel (%p182) target = $region20
        $region19: #{tpu_custom_call.1} parent=11 // pred_region
          _
        $region20: #{tpu_custom_call.1} parent=11 // pred_fallthru
          _
        // Predicated region
        $region21: #{tpu_custom_call.1} parent=11 // pred_check
          %p185 = pneg %p107
        $region22: #{tpu_custom_call.1} parent=11 // pred_check_branch
          %187 = sbr.rel (%p185) target = $region24
        $region23: #{tpu_custom_call.1} parent=11 // pred_region
          %s189 = ssub.s32 6144, 6144
          %190 = vsyncadd [#allocation8], %s189
          %s191 = sshll.u32 [#allocation9], 4
          %s192 = int_to_ptr.vmem [resolvable:$true] %s191
          %197 = dma.hbm_to_vmem [thread:$0]  %s3, 6144, %s192, [#allocation8], 128, 128, 8
        $region24: #{tpu_custom_call.1} parent=11 // pred_fallthru
          _
        // Predicated region
        $region25: #{tpu_custom_call.1} parent=11 // pred_check
          %p198 = pneg %p128
        $region26: #{tpu_custom_call.1} parent=11 // pred_check_branch
          %200 = sbr.rel (%p198) target = $region28
        $region27: #{tpu_custom_call.1} parent=11 // pred_region
          _
        $region28: #{tpu_custom_call.1} parent=11 // pred_fallthru
          _
      $region12: #{tpu_custom_call.1} parent=5 // pred_fallthru
        _
      %p201 = scmp.lt.s32.totalorder %s18, 2
      // Predicated region
      $region29: #{tpu_custom_call.1} parent=5 // pred_check
        %p202 = pneg %p201
      $region30: #{tpu_custom_call.1} parent=5 // pred_check_branch
        %204 = sbr.rel (%p202) target = $region32
      $region31: #{tpu_custom_call.1} parent=5 // pred_region
        // Predicated region
        $region33: #{tpu_custom_call.1} parent=31 // pred_check
          %p205 = pneg %p38
        $region34: #{tpu_custom_call.1} parent=31 // pred_check_branch
          %207 = sbr.rel (%p205) target = $region36
        $region35: #{tpu_custom_call.1} parent=31 // pred_region
          %s208 = sand.u32 %s28, 1
          %s209 = scalar_lea.sflag [#allocation5], %s208
          %s210 = sand.u32 %s28, 1
          %s211 = smul.addr %s210, 32
          %s212 = scalar_lea.vmem [#allocation4], %s211
          %s213 = smul.u32 2, %s18
          %s215 = ssub.s32 512, 512
          %216 = vsyncadd %s209, %s215
          %s217 = smul.addr %s213, 2
          %s218 = smul.addr %s217, 128
          %s219 = scalar_lea.hbm %s0, %s218
          %s220 = sshll.u32 %s212, 4
          %s221 = int_to_ptr.vmem [resolvable:$true] %s220
          %226 = dma.hbm_to_vmem [thread:$0]  %s219, 512, %s221, %s209, 128, 128, 8
        $region36: #{tpu_custom_call.1} parent=31 // pred_fallthru
          _
      $region32: #{tpu_custom_call.1} parent=5 // pred_fallthru
        _
      %p227 = scmp.le.s32.totalorder 1, %s18
      %p228 = scmp.lt.s32.totalorder %s18, 3
      %p229 = pnand %p227, %p228
      %p230 = pneg %p229
      // Predicated region
      $region37: #{tpu_custom_call.1} parent=5 // pred_check
        _
      $region38: #{tpu_custom_call.1} parent=5 // pred_check_branch
        %232 = sbr.rel (%p229) target = $region40
      $region39: #{tpu_custom_call.1} parent=5 // pred_region
        %s233 = ssub.s32 %s18, 1
        %s234 = sand.u32 %s31, 1
        %s235 = scalar_lea.sflag [#allocation5], %s234
        %s236 = sand.u32 %s31, 1
        %s237 = smul.addr %s236, 32
        %s238 = scalar_lea.vmem [#allocation4], %s237
        // Predicated region
        $region41: #{tpu_custom_call.1} parent=39 // pred_check
          %p239 = pneg %p44
        $region42: #{tpu_custom_call.1} parent=39 // pred_check_branch
          %241 = sbr.rel (%p239) target = $region44
        $region43: #{tpu_custom_call.1} parent=39 // pred_region
          %242 = dma.done %s235, 512
        $region44: #{tpu_custom_call.1} parent=39 // pred_fallthru
          _
        // Predicated region
        $region45: #{tpu_custom_call.1} parent=39 // pred_check
          %p243 = pneg %p65
        $region46: #{tpu_custom_call.1} parent=39 // pred_check_branch
          %245 = sbr.rel (%p243) target = $region48
        $region47: #{tpu_custom_call.1} parent=39 // pred_region
          %246 = dma.done [#allocation8], 3072
        $region48: #{tpu_custom_call.1} parent=39 // pred_fallthru
          _
        // Predicated region
        $region49: #{tpu_custom_call.1} parent=39 // pred_check
          %p247 = pneg %p107
        $region50: #{tpu_custom_call.1} parent=39 // pred_check_branch
          %249 = sbr.rel (%p247) target = $region52
        $region51: #{tpu_custom_call.1} parent=39 // pred_region
          %250 = dma.done [#allocation8], 6144
        $region52: #{tpu_custom_call.1} parent=39 // pred_fallthru
          _
        %s251 = sand.u32 %s31, 1
        %s252 = scalar_lea.sflag [#allocation5], %s251
        %s253 = sand.u32 %s31, 1
        %s254 = smul.addr %s253, 32
        %s255 = scalar_lea.vmem [#allocation4], %s254
        %p256 = pneg %p44
        %p257 = pneg %p41
        %p258 = pneg %p65
        %p259 = pneg %p62
        %p260 = pneg %p86
        %p261 = pneg %p83
        %p262 = pneg %p107
        %p263 = pneg %p104
        %p264 = pneg %p128
        %p265 = pneg %p125
        %p266 = pneg %p154
        %p267 = pneg %p151
        %s268 = sand.u32 %s141, 1
        %s269 = scalar_lea.sflag [#allocation6], %s268
        %s270 = sand.u32 %s141, 1
        %s271 = smul.addr %s270, 32
        %s272 = scalar_lea.vmem [#allocation10], %s271
        %s273 = smul.u32 2, %s23
        %s274 = smul.u32 2, %s23
        %vm275 = vcmask 516096
        %276 = vst.msk [vmem:[#allocation2] sm:$0x1] %vm275, 0.0
        %v277 = vld [vmem:[%s238] sm:$0xff]
        %v278 = vld [vmem:[%s238 + $0x8] sm:$0xff]
        %vm279 = vcmask 523264
        %280 = vst.msk [vmem:[#allocation2 + $0x1] sm:$0xff] %vm279, %v277
        %281 = vst.msk [vmem:[#allocation2 + $0x9] sm:$0xff] %vm279, %v278
        %282 = vst.msk [vmem:[#allocation2 + $0x11] sm:$0x1] %vm275, 0.0
        %283 = vst.msk [vmem:[#allocation2 + $0x18] sm:$0x1] %vm275, 0.0
        %s284 = scalar_lea.vmem %s238, 16 [#allocation4]
        %v285 = vld [vmem:[%s284] sm:$0xff]
        %v286 = vld [vmem:[%s284 + $0x8] sm:$0xff]
        %287 = vst.msk [vmem:[#allocation2 + $0x19] sm:$0xff] %vm279, %v285
        %288 = vst.msk [vmem:[#allocation2 + $0x21] sm:$0xff] %vm279, %v286
        %289 = vst.msk [vmem:[#allocation2 + $0x29] sm:$0x1] %vm275, 0.0
        %v290 = vld [vmem:[#allocation2] sm:$0xff]
        %v291 = vld [vmem:[#allocation2 + $0x8] sm:$0xff]
        %v292 = vld [vmem:[#allocation2 + $0x10] sm:$0xff]
        %v293 = vld [vmem:[#allocation2 + $0x18] sm:$0xff]
        %v294 = vld [vmem:[#allocation2 + $0x20] sm:$0xff]
        %v295 = vld [vmem:[#allocation2 + $0x28] sm:$0xff]
        %v296 = vld [vmem:[#allocation7] sm:$0xff]
        %v297 = vld [vmem:[#allocation7 + $0x8] sm:$0xff]
        %v298 = vld [vmem:[#allocation7 + $0x10] sm:$0xff]
        %v299 = vld [vmem:[#allocation7 + $0x18] sm:$0xff]
        %v300 = vld [vmem:[#allocation7 + $0x20] sm:$0xff]
        %v301 = vld [vmem:[#allocation7 + $0x28] sm:$0xff]
        %v302 = vld [vmem:[#allocation7 + $0x30] sm:$0xff]
        %v303 = vld [vmem:[#allocation7 + $0x38] sm:$0xff]
        %v304 = vld [vmem:[#allocation2 + $0x1] sm:$0xff]
        %v305 = vld [vmem:[#allocation2 + $0x9] sm:$0xff]
        %v306 = vld [vmem:[#allocation2 + $0x11] sm:$0xff]
        %v307 = vld [vmem:[#allocation2 + $0x19] sm:$0xff]
        %v308 = vld [vmem:[#allocation2 + $0x21] sm:$0xff]
        %v309 = vld [vmem:[#allocation2 + $0x29] sm:$0xff]
        %s310 = scalar_lea.vmem [#allocation7], 64
        %v311 = vld [vmem:[%s310] sm:$0xff]
        %v312 = vld [vmem:[%s310 + $0x8] sm:$0xff]
        %v313 = vld [vmem:[%s310 + $0x10] sm:$0xff]
        %v314 = vld [vmem:[%s310 + $0x18] sm:$0xff]
        %v315 = vld [vmem:[%s310 + $0x20] sm:$0xff]
        %v316 = vld [vmem:[%s310 + $0x28] sm:$0xff]
        %v317 = vld [vmem:[%s310 + $0x30] sm:$0xff]
        %v318 = vld [vmem:[%s310 + $0x38] sm:$0xff]
        %v320 = vsel %vm279, %v304, 0
        %v323 = vsel %vm279, %v305, 0
        %v326 = vsel %vm279, %v306, 0
        %v329 = vsel %vm279, %v307, 0
        %v332 = vsel %vm279, %v308, 0
        %v335 = vsel %vm279, %v309, 0
        %337 = vmatprep.subr.mxu0 0.0
        %338 = vmatpush1.msra.mxu0 %v311
        %339 = vmatprep.subr.mxu0 0.0
        %340 = vmatpush1.msra.mxu0 %v312
        %341 = vmatprep.subr.mxu0 0.0
        %342 = vmatpush1.msra.mxu0 %v313
        %343 = vmatprep.subr.mxu0 0.0
        %344 = vmatpush1.msra.mxu0 %v314
        %345 = vmatprep.subr.mxu0 0.0
        %346 = vmatpush1.msra.mxu0 %v315
        %347 = vmatprep.subr.mxu0 0.0
        %348 = vmatpush1.msra.mxu0 %v316
        %349 = vmatprep.subr.mxu0 0.0
        %350 = vmatpush1.msra.mxu0 %v317
        %351 = vmatprep.subr.mxu0 0.0
        %352 = vmatpush1.msra.mxu0 %v318
        %353 = vmatprep.subr.mxu0 0.0
        %354 = vmatpush1.msra.mxu0 0.0
        %355 = vmatprep.subr.mxu0 0.0
        %356 = vmatpush1.msra.mxu0 0.0
        %357 = vmatprep.subr.mxu0 0.0
        %358 = vmatpush1.msra.mxu0 0.0
        %359 = vmatprep.subr.mxu0 0.0
        %360 = vmatpush1.msra.mxu0 0.0
        %361 = vmatprep.subr.mxu0 0.0
        %362 = vmatpush1.msra.mxu0 0.0
        %363 = vmatprep.subr.mxu0 0.0
        %364 = vmatpush1.msra.mxu0 0.0
        %365 = vmatprep.subr.mxu0 0.0
        %366 = vmatpush1.msra.mxu0 0.0
        %367 = vmatprep.subr.mxu0 0.0
        %368 = vmatpush1.msra.mxu0 0.0
        %369 = vmatprep.subr.mxu0 0.0
        %370 = vmatpush1.msra.mxu0 0.0
        %371 = vmatprep.subr.mxu0 0.0
        %372 = vmatpush1.msra.mxu0 0.0
        %373 = vmatprep.subr.mxu0 0.0
        %374 = vmatpush1.msra.mxu0 0.0
        %375 = vmatprep.subr.mxu0 0.0
        %376 = vmatpush1.msra.mxu0 0.0
        %377 = vmatprep.subr.mxu0 0.0
        %378 = vmatpush1.msra.mxu0 0.0
        %379 = vmatprep.subr.mxu0 0.0
        %380 = vmatpush1.msra.mxu0 0.0
        %381 = vmatprep.subr.mxu0 0.0
        %382 = vmatpush1.msra.mxu0 0.0
        %383 = vmatprep.subr.mxu0 0.0
        %384 = vmatpush1.msra.mxu0 0.0
        %385 = vmatprep.subr.mxu0 0.0
        %386 = vmatpush1.msra.mxu0 0.0
        %387 = vmatprep.subr.mxu0 0.0
        %388 = vmatpush1.msra.mxu0 0.0
        %389 = vmatprep.subr.mxu0 0.0
        %390 = vmatpush1.msra.mxu0 0.0
        %391 = vmatprep.subr.mxu0 0.0
        %392 = vmatpush1.msra.mxu0 0.0
        %393 = vmatprep.subr.mxu0 0.0
        %394 = vmatpush1.msra.mxu0 0.0
        %395 = vmatprep.subr.mxu0 0.0
        %396 = vmatpush1.msra.mxu0 0.0
        %397 = vmatprep.subr.mxu0 0.0
        %398 = vmatpush1.msra.mxu0 0.0
        %399 = vmatprep.subr.mxu0 0.0
        %400 = vmatpush1.msra.mxu0 0.0
        %401 = vmatprep.mubr.f32.mxu0 0.0
        %402 = vmatmul.mubr.f32.gmra.mrb[0].mxu0 %v320
        %v403 = vpop.f32.mrb[0].mxu0
        %v404 = vadd.f32 0.0, %v403
        %v405 = vpop.f32.mrb[0].mxu0
        %406 = vmatprep.mubr.f32.mxu0 0.0
        %407 = vmatmul.mubr.f32.gmra.mrb[0].mxu0 %v323
        %v408 = vpop.f32.mrb[0].mxu0
        %v409 = vadd.f32 0.0, %v408
        %v410 = vpop.f32.mrb[0].mxu0
        %411 = vmatprep.mubr.f32.mxu0 0.0
        %412 = vmatmul.mubr.f32.gmra.mrb[0].mxu0 %v326
        %v413 = vpop.f32.mrb[0].mxu0
        %v414 = vadd.f32 0.0, %v413
        %v415 = vpop.f32.mrb[0].mxu0
        %416 = vmatprep.mubr.f32.mxu0 0.0
        %417 = vmatmul.mubr.f32.gmra.mrb[0].mxu0 %v329
        %v418 = vpop.f32.mrb[0].mxu0
        %v419 = vadd.f32 0.0, %v418
        %v420 = vpop.f32.mrb[0].mxu0
        %421 = vmatprep.mubr.f32.mxu0 0.0
        %422 = vmatmul.mubr.f32.gmra.mrb[0].mxu0 %v332
        %v423 = vpop.f32.mrb[0].mxu0
        %v424 = vadd.f32 0.0, %v423
        %v425 = vpop.f32.mrb[0].mxu0
        %426 = vmatprep.mubr.f32.mxu0 0.0
        %427 = vmatmul.mubr.f32.gmra.mrb[0].mxu0 %v335
        %v428 = vpop.f32.mrb[0].mxu0
        %v429 = vadd.f32 0.0, %v428
        %v430 = vpop.f32.mrb[0].mxu0
        %431 = vdwg.mxu0
        %v433 = vsel %vm279, %v290, 0
        %v436 = vsel %vm279, %v291, 0
        %v439 = vsel %vm279, %v292, 0
        %v442 = vsel %vm279, %v293, 0
        %v445 = vsel %vm279, %v294, 0
        %v448 = vsel %vm279, %v295, 0
        %450 = vmatprep.subr.mxu0 0.0
        %451 = vmatpush1.msra.mxu0 %v296
        %452 = vmatprep.subr.mxu0 0.0
        %453 = vmatpush1.msra.mxu0 %v297
        %454 = vmatprep.subr.mxu0 0.0
        %455 = vmatpush1.msra.mxu0 %v298
        %456 = vmatprep.subr.mxu0 0.0
        %457 = vmatpush1.msra.mxu0 %v299
        %458 = vmatprep.subr.mxu0 0.0
        %459 = vmatpush1.msra.mxu0 %v300
        %460 = vmatprep.subr.mxu0 0.0
        %461 = vmatpush1.msra.mxu0 %v301
        %462 = vmatprep.subr.mxu0 0.0
        %463 = vmatpush1.msra.mxu0 %v302
        %464 = vmatprep.subr.mxu0 0.0
        %465 = vmatpush1.msra.mxu0 %v303
        %466 = vmatprep.subr.mxu0 0.0
        %467 = vmatpush1.msra.mxu0 0.0
        %468 = vmatprep.subr.mxu0 0.0
        %469 = vmatpush1.msra.mxu0 0.0
        %470 = vmatprep.subr.mxu0 0.0
        %471 = vmatpush1.msra.mxu0 0.0
        %472 = vmatprep.subr.mxu0 0.0
        %473 = vmatpush1.msra.mxu0 0.0
        %474 = vmatprep.subr.mxu0 0.0
        %475 = vmatpush1.msra.mxu0 0.0
        %476 = vmatprep.subr.mxu0 0.0
        %477 = vmatpush1.msra.mxu0 0.0
        %478 = vmatprep.subr.mxu0 0.0
        %479 = vmatpush1.msra.mxu0 0.0
        %480 = vmatprep.subr.mxu0 0.0
        %481 = vmatpush1.msra.mxu0 0.0
        %482 = vmatprep.subr.mxu0 0.0
        %483 = vmatpush1.msra.mxu0 0.0
        %484 = vmatprep.subr.mxu0 0.0
        %485 = vmatpush1.msra.mxu0 0.0
        %486 = vmatprep.subr.mxu0 0.0
        %487 = vmatpush1.msra.mxu0 0.0
        %488 = vmatprep.subr.mxu0 0.0
        %489 = vmatpush1.msra.mxu0 0.0
        %490 = vmatprep.subr.mxu0 0.0
        %491 = vmatpush1.msra.mxu0 0.0
        %492 = vmatprep.subr.mxu0 0.0
        %493 = vmatpush1.msra.mxu0 0.0
        %494 = vmatprep.subr.mxu0 0.0
        %495 = vmatpush1.msra.mxu0 0.0
        %496 = vmatprep.subr.mxu0 0.0
        %497 = vmatpush1.msra.mxu0 0.0
        %498 = vmatprep.subr.mxu0 0.0
        %499 = vmatpush1.msra.mxu0 0.0
        %500 = vmatprep.subr.mxu0 0.0
        %501 = vmatpush1.msra.mxu0 0.0
        %502 = vmatprep.subr.mxu0 0.0
        %503 = vmatpush1.msra.mxu0 0.0
        %504 = vmatprep.subr.mxu0 0.0
        %505 = vmatpush1.msra.mxu0 0.0
        %506 = vmatprep.subr.mxu0 0.0
        %507 = vmatpush1.msra.mxu0 0.0
        %508 = vmatprep.subr.mxu0 0.0
        %509 = vmatpush1.msra.mxu0 0.0
        %510 = vmatprep.subr.mxu0 0.0
        %511 = vmatpush1.msra.mxu0 0.0
        %512 = vmatprep.subr.mxu0 0.0
        %513 = vmatpush1.msra.mxu0 0.0
        %514 = vmatprep.mubr.f32.mxu0 0.0
        %515 = vmatmul.mubr.f32.gmra.mrb[0].mxu0 %v433
        %v516 = vpop.f32.mrb[0].mxu0
        %v517 = vadd.f32 %v404, %v516
        %v518 = vpop.f32.mrb[0].mxu0
        %519 = vmatprep.mubr.f32.mxu0 0.0
        %520 = vmatmul.mubr.f32.gmra.mrb[0].mxu0 %v436
        %v521 = vpop.f32.mrb[0].mxu0
        %v522 = vadd.f32 %v409, %v521
        %v523 = vpop.f32.mrb[0].mxu0
        %524 = vmatprep.mubr.f32.mxu0 0.0
        %525 = vmatmul.mubr.f32.gmra.mrb[0].mxu0 %v439
        %v526 = vpop.f32.mrb[0].mxu0
        %v527 = vadd.f32 %v414, %v526
        %v528 = vpop.f32.mrb[0].mxu0
        %529 = vmatprep.mubr.f32.mxu0 0.0
        %530 = vmatmul.mubr.f32.gmra.mrb[0].mxu0 %v442
        %v531 = vpop.f32.mrb[0].mxu0
        %v532 = vadd.f32 %v419, %v531
        %v533 = vpop.f32.mrb[0].mxu0
        %534 = vmatprep.mubr.f32.mxu0 0.0
        %535 = vmatmul.mubr.f32.gmra.mrb[0].mxu0 %v445
        %v536 = vpop.f32.mrb[0].mxu0
        %v537 = vadd.f32 %v424, %v536
        %v538 = vpop.f32.mrb[0].mxu0
        %539 = vmatprep.mubr.f32.mxu0 0.0
        %540 = vmatmul.mubr.f32.gmra.mrb[0].mxu0 %v448
        %v541 = vpop.f32.mrb[0].mxu0
        %v542 = vadd.f32 %v429, %v541
        %v543 = vpop.f32.mrb[0].mxu0
        %544 = vdwg.mxu0
        %v545 = vld [vmem:[#allocation2 + $0x2] sm:$0xff]
        %v546 = vld [vmem:[#allocation2 + $0xa] sm:$0xff]
        %v547 = vld [vmem:[#allocation2 + $0x12] sm:$0xff]
        %v548 = vld [vmem:[#allocation2 + $0x1a] sm:$0xff]
        %v549 = vld [vmem:[#allocation2 + $0x22] sm:$0xff]
        %v550 = vld [vmem:[#allocation2 + $0x2a] sm:$0xff]
        %s551 = scalar_lea.vmem [#allocation7], 128
        %v552 = vld [vmem:[%s551] sm:$0xff]
        %v553 = vld [vmem:[%s551 + $0x8] sm:$0xff]
        %v554 = vld [vmem:[%s551 + $0x10] sm:$0xff]
        %v555 = vld [vmem:[%s551 + $0x18] sm:$0xff]
        %v556 = vld [vmem:[%s551 + $0x20] sm:$0xff]
        %v557 = vld [vmem:[%s551 + $0x28] sm:$0xff]
        %v558 = vld [vmem:[%s551 + $0x30] sm:$0xff]
        %v559 = vld [vmem:[%s551 + $0x38] sm:$0xff]
        %v561 = vsel %vm279, %v545, 0
        %v564 = vsel %vm279, %v546, 0
        %v567 = vsel %vm279, %v547, 0
        %v570 = vsel %vm279, %v548, 0
        %v573 = vsel %vm279, %v549, 0
        %v576 = vsel %vm279, %v550, 0
        %578 = vmatprep.subr.mxu0 0.0
        %579 = vmatpush1.msra.mxu0 %v552
        %580 = vmatprep.subr.mxu0 0.0
        %581 = vmatpush1.msra.mxu0 %v553
        %582 = vmatprep.subr.mxu0 0.0
        %583 = vmatpush1.msra.mxu0 %v554
        %584 = vmatprep.subr.mxu0 0.0
        %585 = vmatpush1.msra.mxu0 %v555
        %586 = vmatprep.subr.mxu0 0.0
        %587 = vmatpush1.msra.mxu0 %v556
        %588 = vmatprep.subr.mxu0 0.0
        %589 = vmatpush1.msra.mxu0 %v557
        %590 = vmatprep.subr.mxu0 0.0
        %591 = vmatpush1.msra.mxu0 %v558
        %592 = vmatprep.subr.mxu0 0.0
        %593 = vmatpush1.msra.mxu0 %v559
        %594 = vmatprep.subr.mxu0 0.0
        %595 = vmatpush1.msra.mxu0 0.0
        %596 = vmatprep.subr.mxu0 0.0
        %597 = vmatpush1.msra.mxu0 0.0
        %598 = vmatprep.subr.mxu0 0.0
        %599 = vmatpush1.msra.mxu0 0.0
        %600 = vmatprep.subr.mxu0 0.0
        %601 = vmatpush1.msra.mxu0 0.0
        %602 = vmatprep.subr.mxu0 0.0
        %603 = vmatpush1.msra.mxu0 0.0
        %604 = vmatprep.subr.mxu0 0.0
        %605 = vmatpush1.msra.mxu0 0.0
        %606 = vmatprep.subr.mxu0 0.0
        %607 = vmatpush1.msra.mxu0 0.0
        %608 = vmatprep.subr.mxu0 0.0
        %609 = vmatpush1.msra.mxu0 0.0
        %610 = vmatprep.subr.mxu0 0.0
        %611 = vmatpush1.msra.mxu0 0.0
        %612 = vmatprep.subr.mxu0 0.0
        %613 = vmatpush1.msra.mxu0 0.0
        %614 = vmatprep.subr.mxu0 0.0
        %615 = vmatpush1.msra.mxu0 0.0
        %616 = vmatprep.subr.mxu0 0.0
        %617 = vmatpush1.msra.mxu0 0.0
        %618 = vmatprep.subr.mxu0 0.0
        %619 = vmatpush1.msra.mxu0 0.0
        %620 = vmatprep.subr.mxu0 0.0
        %621 = vmatpush1.msra.mxu0 0.0
        %622 = vmatprep.subr.mxu0 0.0
        %623 = vmatpush1.msra.mxu0 0.0
        %624 = vmatprep.subr.mxu0 0.0
        %625 = vmatpush1.msra.mxu0 0.0
        %626 = vmatprep.subr.mxu0 0.0
        %627 = vmatpush1.msra.mxu0 0.0
        %628 = vmatprep.subr.mxu0 0.0
        %629 = vmatpush1.msra.mxu0 0.0
        %630 = vmatprep.subr.mxu0 0.0
        %631 = vmatpush1.msra.mxu0 0.0
        %632 = vmatprep.subr.mxu0 0.0
        %633 = vmatpush1.msra.mxu0 0.0
        %634 = vmatprep.subr.mxu0 0.0
        %635 = vmatpush1.msra.mxu0 0.0
        %636 = vmatprep.subr.mxu0 0.0
        %637 = vmatpush1.msra.mxu0 0.0
        %638 = vmatprep.subr.mxu0 0.0
        %639 = vmatpush1.msra.mxu0 0.0
        %640 = vmatprep.subr.mxu0 0.0
        %641 = vmatpush1.msra.mxu0 0.0
        %642 = vmatprep.mubr.f32.mxu0 0.0
        %643 = vmatmul.mubr.f32.gmra.mrb[0].mxu0 %v561
        %v644 = vpop.f32.mrb[0].mxu0
        %v645 = vadd.f32 0.0, %v644
        %v646 = vpop.f32.mrb[0].mxu0
        %647 = vmatprep.mubr.f32.mxu0 0.0
        %648 = vmatmul.mubr.f32.gmra.mrb[0].mxu0 %v564
        %v649 = vpop.f32.mrb[0].mxu0
        %v650 = vadd.f32 0.0, %v649
        %v651 = vpop.f32.mrb[0].mxu0
        %652 = vmatprep.mubr.f32.mxu0 0.0
        %653 = vmatmul.mubr.f32.gmra.mrb[0].mxu0 %v567
        %v654 = vpop.f32.mrb[0].mxu0
        %v655 = vadd.f32 0.0, %v654
        %v656 = vpop.f32.mrb[0].mxu0
        %657 = vmatprep.mubr.f32.mxu0 0.0
        %658 = vmatmul.mubr.f32.gmra.mrb[0].mxu0 %v570
        %v659 = vpop.f32.mrb[0].mxu0
        %v660 = vadd.f32 0.0, %v659
        %v661 = vpop.f32.mrb[0].mxu0
        %662 = vmatprep.mubr.f32.mxu0 0.0
        %663 = vmatmul.mubr.f32.gmra.mrb[0].mxu0 %v573
        %v664 = vpop.f32.mrb[0].mxu0
        %v665 = vadd.f32 0.0, %v664
        %v666 = vpop.f32.mrb[0].mxu0
        %667 = vmatprep.mubr.f32.mxu0 0.0
        %668 = vmatmul.mubr.f32.gmra.mrb[0].mxu0 %v576
        %v669 = vpop.f32.mrb[0].mxu0
        %v670 = vadd.f32 0.0, %v669
        %v671 = vpop.f32.mrb[0].mxu0
        %672 = vdwg.mxu0
        %v673 = vadd.f32 %v517, %v645
        %v674 = vadd.f32 %v522, %v650
        %v675 = vadd.f32 %v527, %v655
        %v676 = vadd.f32 %v532, %v660
        %v677 = vadd.f32 %v537, %v665
        %v678 = vadd.f32 %v542, %v670
        %v679 = vlaneseq
        %v680 = vshrl.u32 %v679, 7
        %v681 = vadd.s32 %v680, 8
        %v682 = vadd.s32 %v680, 16
        %v683 = vadd.s32 %v680, 24
        %v684 = vadd.s32 %v680, 32
        %v685 = vadd.s32 %v680, 40
        %vm686 = vcmp.ge.s32.totalorder %v680, 16
        %vm687 = vcmp.ge.s32.totalorder %v681, 16
        %vm688 = vcmp.ge.s32.totalorder %v682, 16
        %vm689 = vcmp.ge.s32.totalorder %v683, 16
        %vm690 = vcmp.ge.s32.totalorder %v684, 16
        %vm691 = vcmp.ge.s32.totalorder %v685, 16
        %vm692 = vcmp.lt.s32.totalorder %v680, 24
        %vm693 = vcmp.lt.s32.totalorder %v681, 24
        %vm694 = vcmp.lt.s32.totalorder %v682, 24
        %vm695 = vcmp.lt.s32.totalorder %v683, 24
        %vm696 = vcmp.lt.s32.totalorder %v684, 24
        %vm697 = vcmp.lt.s32.totalorder %v685, 24
        %vm698 = vmand %vm686, %vm692
        %vm699 = vmand %vm687, %vm693
        %vm700 = vmand %vm688, %vm694
        %vm701 = vmand %vm689, %vm695
        %vm702 = vmand %vm690, %vm696
        %vm703 = vmand %vm691, %vm697
        %vm704 = vcmp.ge.s32.totalorder %v680, 40
        %vm705 = vcmp.ge.s32.totalorder %v681, 40
        %vm706 = vcmp.ge.s32.totalorder %v682, 40
        %vm707 = vcmp.ge.s32.totalorder %v683, 40
        %vm708 = vcmp.ge.s32.totalorder %v684, 40
        %vm709 = vcmp.ge.s32.totalorder %v685, 40
        %vm710 = vcmp.lt.s32.totalorder %v680, 48
        %vm711 = vcmp.lt.s32.totalorder %v681, 48
        %vm712 = vcmp.lt.s32.totalorder %v682, 48
        %vm713 = vcmp.lt.s32.totalorder %v683, 48
        %vm714 = vcmp.lt.s32.totalorder %v684, 48
        %vm715 = vcmp.lt.s32.totalorder %v685, 48
        %vm716 = vmand %vm704, %vm710
        %vm717 = vmand %vm705, %vm711
        %vm718 = vmand %vm706, %vm712
        %vm719 = vmand %vm707, %vm713
        %vm720 = vmand %vm708, %vm714
        %vm721 = vmand %vm709, %vm715
        %vm722 = vmor %vm698, %vm716
        %vm723 = vmor %vm699, %vm717
        %vm724 = vmor %vm700, %vm718
        %vm725 = vmor %vm701, %vm719
        %vm726 = vmor %vm702, %vm720
        %vm727 = vmor %vm703, %vm721
        %v728 = vld [vmem:[%s2] sm:$0x1]
        %v730 = vlaneseq
        %v731 = vshrl.u32 %v730, 7
        %v732 = vsub.s32 0, %v731
        %v733 = vrot.slane %v728, %v732
        %v735 = vadd.f32 %v673, %v733
        %v736 = vadd.f32 %v674, %v733
        %v737 = vadd.f32 %v675, %v733
        %v738 = vadd.f32 %v676, %v733
        %v739 = vadd.f32 %v677, %v733
        %v740 = vadd.f32 %v678, %v733
        %v741 = vmax.f32 %v735, 0.0
        %v742 = vmax.f32 %v736, 0.0
        %v743 = vmax.f32 %v737, 0.0
        %v744 = vmax.f32 %v738, 0.0
        %v745 = vmax.f32 %v739, 0.0
        %v746 = vmax.f32 %v740, 0.0
        %v747 = vsel %vm722, 1, 0
        %v748 = vsel %vm723, 1, 0
        %v749 = vsel %vm724, 1, 0
        %v750 = vsel %vm725, 1, 0
        %v751 = vsel %vm726, 1, 0
        %v752 = vsel %vm727, 1, 0
        %vm753 = vcmp.eq.s32.totalorder %v747, 1
        %vm754 = vcmp.eq.s32.totalorder %v748, 1
        %vm755 = vcmp.eq.s32.totalorder %v749, 1
        %vm756 = vcmp.eq.s32.totalorder %v750, 1
        %vm757 = vcmp.eq.s32.totalorder %v751, 1
        %vm758 = vcmp.eq.s32.totalorder %v752, 1
        %v759 = vsel %vm753, 0.0, %v741
        %v760 = vsel %vm754, 0.0, %v742
        %v761 = vsel %vm755, 0.0, %v743
        %v762 = vsel %vm756, 0.0, %v744
        %v763 = vsel %vm757, 0.0, %v745
        %v764 = vsel %vm758, 0.0, %v746
        %765 = vst [vmem:[#allocation3] sm:$0x1] 0.0
        %766 = vst [vmem:[#allocation3 + $0x1] sm:$0xff] %v759
        %767 = vst [vmem:[#allocation3 + $0x9] sm:$0xff] %v760
        %768 = vst [vmem:[#allocation3 + $0x11] sm:$0xff] %v761
        %769 = vst [vmem:[#allocation3 + $0x19] sm:$0xff] %v762
        %770 = vst [vmem:[#allocation3 + $0x21] sm:$0xff] %v763
        %771 = vst [vmem:[#allocation3 + $0x29] sm:$0xff] %v764
        %772 = vst [vmem:[#allocation3 + $0x31] sm:$0x1] 0.0
        %v773 = vld [vmem:[#allocation3] sm:$0xff]
        %v774 = vld [vmem:[#allocation3 + $0x8] sm:$0xff]
        %v775 = vld [vmem:[#allocation3 + $0x10] sm:$0xff]
        %v776 = vld [vmem:[#allocation3 + $0x18] sm:$0xff]
        %v777 = vld [vmem:[#allocation3 + $0x20] sm:$0xff]
        %v778 = vld [vmem:[#allocation3 + $0x28] sm:$0xff]
        %v779 = vld [vmem:[#allocation9] sm:$0xff]
        %v780 = vld [vmem:[#allocation9 + $0x8] sm:$0xff]
        %v781 = vld [vmem:[#allocation9 + $0x10] sm:$0xff]
        %v782 = vld [vmem:[#allocation9 + $0x18] sm:$0xff]
        %v783 = vld [vmem:[#allocation9 + $0x20] sm:$0xff]
        %v784 = vld [vmem:[#allocation9 + $0x28] sm:$0xff]
        %v785 = vld [vmem:[#allocation9 + $0x30] sm:$0xff]
        %v786 = vld [vmem:[#allocation9 + $0x38] sm:$0xff]
        %v787 = vld [vmem:[#allocation9 + $0x40] sm:$0xff]
        %v788 = vld [vmem:[#allocation9 + $0x48] sm:$0xff]
        %v789 = vld [vmem:[#allocation9 + $0x50] sm:$0xff]
        %v790 = vld [vmem:[#allocation9 + $0x58] sm:$0xff]
        %v791 = vld [vmem:[#allocation9 + $0x60] sm:$0xff]
        %v792 = vld [vmem:[#allocation9 + $0x68] sm:$0xff]
        %v793 = vld [vmem:[#allocation9 + $0x70] sm:$0xff]
        %v794 = vld [vmem:[#allocation9 + $0x78] sm:$0xff]
        %v795 = vld [vmem:[#allocation3 + $0x1] sm:$0xff]
        %v796 = vld [vmem:[#allocation3 + $0x9] sm:$0xff]
        %v797 = vld [vmem:[#allocation3 + $0x11] sm:$0xff]
        %v798 = vld [vmem:[#allocation3 + $0x19] sm:$0xff]
        %v799 = vld [vmem:[#allocation3 + $0x21] sm:$0xff]
        %v800 = vld [vmem:[#allocation3 + $0x29] sm:$0xff]
        %s801 = scalar_lea.vmem [#allocation9], 128
        %v802 = vld [vmem:[%s801] sm:$0xff]
        %v803 = vld [vmem:[%s801 + $0x8] sm:$0xff]
        %v804 = vld [vmem:[%s801 + $0x10] sm:$0xff]
        %v805 = vld [vmem:[%s801 + $0x18] sm:$0xff]
        %v806 = vld [vmem:[%s801 + $0x20] sm:$0xff]
        %v807 = vld [vmem:[%s801 + $0x28] sm:$0xff]
        %v808 = vld [vmem:[%s801 + $0x30] sm:$0xff]
        %v809 = vld [vmem:[%s801 + $0x38] sm:$0xff]
        %v810 = vld [vmem:[%s801 + $0x40] sm:$0xff]
        %v811 = vld [vmem:[%s801 + $0x48] sm:$0xff]
        %v812 = vld [vmem:[%s801 + $0x50] sm:$0xff]
        %v813 = vld [vmem:[%s801 + $0x58] sm:$0xff]
        %v814 = vld [vmem:[%s801 + $0x60] sm:$0xff]
        %v815 = vld [vmem:[%s801 + $0x68] sm:$0xff]
        %v816 = vld [vmem:[%s801 + $0x70] sm:$0xff]
        %v817 = vld [vmem:[%s801 + $0x78] sm:$0xff]
        %818 = vmatprep.subr.mxu0 0.0
        %819 = vmatpush1.msra.mxu0 %v802
        %820 = vmatprep.subr.mxu0 0.0
        %821 = vmatpush1.msra.mxu0 %v803
        %822 = vmatprep.subr.mxu0 0.0
        %823 = vmatpush1.msra.mxu0 %v804
        %824 = vmatprep.subr.mxu0 0.0
        %825 = vmatpush1.msra.mxu0 %v805
        %826 = vmatprep.subr.mxu0 0.0
        %827 = vmatpush1.msra.mxu0 %v806
        %828 = vmatprep.subr.mxu0 0.0
        %829 = vmatpush1.msra.mxu0 %v807
        %830 = vmatprep.subr.mxu0 0.0
        %831 = vmatpush1.msra.mxu0 %v808
        %832 = vmatprep.subr.mxu0 0.0
        %833 = vmatpush1.msra.mxu0 %v809
        %834 = vmatprep.subr.mxu0 0.0
        %835 = vmatpush1.msra.mxu0 %v810
        %836 = vmatprep.subr.mxu0 0.0
        %837 = vmatpush1.msra.mxu0 %v811
        %838 = vmatprep.subr.mxu0 0.0
        %839 = vmatpush1.msra.mxu0 %v812
        %840 = vmatprep.subr.mxu0 0.0
        %841 = vmatpush1.msra.mxu0 %v813
        %842 = vmatprep.subr.mxu0 0.0
        %843 = vmatpush1.msra.mxu0 %v814
        %844 = vmatprep.subr.mxu0 0.0
        %845 = vmatpush1.msra.mxu0 %v815
        %846 = vmatprep.subr.mxu0 0.0
        %847 = vmatpush1.msra.mxu0 %v816
        %848 = vmatprep.subr.mxu0 0.0
        %849 = vmatpush1.msra.mxu0 %v817
        %850 = vmatprep.subr.mxu0 0.0
        %851 = vmatpush1.msra.mxu0 0.0
        %852 = vmatprep.subr.mxu0 0.0
        %853 = vmatpush1.msra.mxu0 0.0
        %854 = vmatprep.subr.mxu0 0.0
        %855 = vmatpush1.msra.mxu0 0.0
        %856 = vmatprep.subr.mxu0 0.0
        %857 = vmatpush1.msra.mxu0 0.0
        %858 = vmatprep.subr.mxu0 0.0
        %859 = vmatpush1.msra.mxu0 0.0
        %860 = vmatprep.subr.mxu0 0.0
        %861 = vmatpush1.msra.mxu0 0.0
        %862 = vmatprep.subr.mxu0 0.0
        %863 = vmatpush1.msra.mxu0 0.0
        %864 = vmatprep.subr.mxu0 0.0
        %865 = vmatpush1.msra.mxu0 0.0
        %866 = vmatprep.subr.mxu0 0.0
        %867 = vmatpush1.msra.mxu0 0.0
        %868 = vmatprep.subr.mxu0 0.0
        %869 = vmatpush1.msra.mxu0 0.0
        %870 = vmatprep.subr.mxu0 0.0
        %871 = vmatpush1.msra.mxu0 0.0
        %872 = vmatprep.subr.mxu0 0.0
        %873 = vmatpush1.msra.mxu0 0.0
        %874 = vmatprep.subr.mxu0 0.0
        %875 = vmatpush1.msra.mxu0 0.0
        %876 = vmatprep.subr.mxu0 0.0
        %877 = vmatpush1.msra.mxu0 0.0
        %878 = vmatprep.subr.mxu0 0.0
        %879 = vmatpush1.msra.mxu0 0.0
        %880 = vmatprep.subr.mxu0 0.0
        %881 = vmatpush1.msra.mxu0 0.0
        %882 = vmatprep.mubr.f32.mxu0 0.0
        %883 = vmatmul.mubr.f32.gmra.mrb[0].mxu0 %v795
        %v884 = vpop.f32.mrb[0].mxu0
        %v885 = vadd.f32 0.0, %v884
        %v886 = vpop.f32.mrb[0].mxu0
        %887 = vmatprep.mubr.f32.mxu0 0.0
        %888 = vmatmul.mubr.f32.gmra.mrb[0].mxu0 %v796
        %v889 = vpop.f32.mrb[0].mxu0
        %v890 = vadd.f32 0.0, %v889
        %v891 = vpop.f32.mrb[0].mxu0
        %892 = vmatprep.mubr.f32.mxu0 0.0
        %893 = vmatmul.mubr.f32.gmra.mrb[0].mxu0 %v797
        %v894 = vpop.f32.mrb[0].mxu0
        %v895 = vpop.f32.mrb[0].mxu0
        %896 = vmatprep.mubr.f32.mxu0 0.0
        %897 = vmatmul.mubr.f32.gmra.mrb[0].mxu0 %v798
        %v898 = vpop.f32.mrb[0].mxu0
        %v899 = vadd.f32 0.0, %v898
        %v900 = vpop.f32.mrb[0].mxu0
        %901 = vmatprep.mubr.f32.mxu0 0.0
        %902 = vmatmul.mubr.f32.gmra.mrb[0].mxu0 %v799
        %v903 = vpop.f32.mrb[0].mxu0
        %v904 = vadd.f32 0.0, %v903
        %v905 = vpop.f32.mrb[0].mxu0
        %906 = vmatprep.mubr.f32.mxu0 0.0
        %907 = vmatmul.mubr.f32.gmra.mrb[0].mxu0 %v800
        %v908 = vpop.f32.mrb[0].mxu0
        %v909 = vpop.f32.mrb[0].mxu0
        %910 = vdwg.mxu0
        %911 = vmatprep.subr.mxu0 0.0
        %912 = vmatpush1.msra.mxu0 %v779
        %913 = vmatprep.subr.mxu0 0.0
        %914 = vmatpush1.msra.mxu0 %v780
        %915 = vmatprep.subr.mxu0 0.0
        %916 = vmatpush1.msra.mxu0 %v781
        %917 = vmatprep.subr.mxu0 0.0
        %918 = vmatpush1.msra.mxu0 %v782
        %919 = vmatprep.subr.mxu0 0.0
        %920 = vmatpush1.msra.mxu0 %v783
        %921 = vmatprep.subr.mxu0 0.0
        %922 = vmatpush1.msra.mxu0 %v784
        %923 = vmatprep.subr.mxu0 0.0
        %924 = vmatpush1.msra.mxu0 %v785
        %925 = vmatprep.subr.mxu0 0.0
        %926 = vmatpush1.msra.mxu0 %v786
        %927 = vmatprep.subr.mxu0 0.0
        %928 = vmatpush1.msra.mxu0 %v787
        %929 = vmatprep.subr.mxu0 0.0
        %930 = vmatpush1.msra.mxu0 %v788
        %931 = vmatprep.subr.mxu0 0.0
        %932 = vmatpush1.msra.mxu0 %v789
        %933 = vmatprep.subr.mxu0 0.0
        %934 = vmatpush1.msra.mxu0 %v790
        %935 = vmatprep.subr.mxu0 0.0
        %936 = vmatpush1.msra.mxu0 %v791
        %937 = vmatprep.subr.mxu0 0.0
        %938 = vmatpush1.msra.mxu0 %v792
        %939 = vmatprep.subr.mxu0 0.0
        %940 = vmatpush1.msra.mxu0 %v793
        %941 = vmatprep.subr.mxu0 0.0
        %942 = vmatpush1.msra.mxu0 %v794
        %943 = vmatprep.subr.mxu0 0.0
        %944 = vmatpush1.msra.mxu0 0.0
        %945 = vmatprep.subr.mxu0 0.0
        %946 = vmatpush1.msra.mxu0 0.0
        %947 = vmatprep.subr.mxu0 0.0
        %948 = vmatpush1.msra.mxu0 0.0
        %949 = vmatprep.subr.mxu0 0.0
        %950 = vmatpush1.msra.mxu0 0.0
        %951 = vmatprep.subr.mxu0 0.0
        %952 = vmatpush1.msra.mxu0 0.0
        %953 = vmatprep.subr.mxu0 0.0
        %954 = vmatpush1.msra.mxu0 0.0
        %955 = vmatprep.subr.mxu0 0.0
        %956 = vmatpush1.msra.mxu0 0.0
        %957 = vmatprep.subr.mxu0 0.0
        %958 = vmatpush1.msra.mxu0 0.0
        %959 = vmatprep.subr.mxu0 0.0
        %960 = vmatpush1.msra.mxu0 0.0
        %961 = vmatprep.subr.mxu0 0.0
        %962 = vmatpush1.msra.mxu0 0.0
        %963 = vmatprep.subr.mxu0 0.0
        %964 = vmatpush1.msra.mxu0 0.0
        %965 = vmatprep.subr.mxu0 0.0
        %966 = vmatpush1.msra.mxu0 0.0
        %967 = vmatprep.subr.mxu0 0.0
        %968 = vmatpush1.msra.mxu0 0.0
        %969 = vmatprep.subr.mxu0 0.0
        %970 = vmatpush1.msra.mxu0 0.0
        %971 = vmatprep.subr.mxu0 0.0
        %972 = vmatpush1.msra.mxu0 0.0
        %973 = vmatprep.subr.mxu0 0.0
        %974 = vmatpush1.msra.mxu0 0.0
        %975 = vmatprep.mubr.f32.mxu0 0.0
        %976 = vmatmul.mubr.f32.gmra.mrb[0].mxu0 %v773
        %v977 = vpop.f32.mrb[0].mxu0
        %v978 = vadd.f32 %v885, %v977
        %v979 = vpop.f32.mrb[0].mxu0
        %980 = vmatprep.mubr.f32.mxu0 0.0
        %981 = vmatmul.mubr.f32.gmra.mrb[0].mxu0 %v774
        %v982 = vpop.f32.mrb[0].mxu0
        %v983 = vadd.f32 %v890, %v982
        %v984 = vpop.f32.mrb[0].mxu0
        %985 = vmatprep.mubr.f32.mxu0 0.0
        %986 = vmatmul.mubr.f32.gmra.mrb[0].mxu0 %v775
        %v987 = vpop.f32.mrb[0].mxu0
        %v988 = vpop.f32.mrb[0].mxu0
        %989 = vmatprep.mubr.f32.mxu0 0.0
        %990 = vmatmul.mubr.f32.gmra.mrb[0].mxu0 %v776
        %v991 = vpop.f32.mrb[0].mxu0
        %v992 = vadd.f32 %v899, %v991
        %v993 = vpop.f32.mrb[0].mxu0
        %994 = vmatprep.mubr.f32.mxu0 0.0
        %995 = vmatmul.mubr.f32.gmra.mrb[0].mxu0 %v777
        %v996 = vpop.f32.mrb[0].mxu0
        %v997 = vadd.f32 %v904, %v996
        %v998 = vpop.f32.mrb[0].mxu0
        %999 = vmatprep.mubr.f32.mxu0 0.0
        %1000 = vmatmul.mubr.f32.gmra.mrb[0].mxu0 %v778
        %v1001 = vpop.f32.mrb[0].mxu0
        %v1002 = vpop.f32.mrb[0].mxu0
        %1003 = vdwg.mxu0
        %v1004 = vld [vmem:[#allocation3 + $0x2] sm:$0xff]
        %v1005 = vld [vmem:[#allocation3 + $0xa] sm:$0xff]
        %v1006 = vld [vmem:[#allocation3 + $0x12] sm:$0xff]
        %v1007 = vld [vmem:[#allocation3 + $0x1a] sm:$0xff]
        %v1008 = vld [vmem:[#allocation3 + $0x22] sm:$0xff]
        %v1009 = vld [vmem:[#allocation3 + $0x2a] sm:$0xff]
        %s1010 = scalar_lea.vmem [#allocation9], 256
        %v1011 = vld [vmem:[%s1010] sm:$0xff]
        %v1012 = vld [vmem:[%s1010 + $0x8] sm:$0xff]
        %v1013 = vld [vmem:[%s1010 + $0x10] sm:$0xff]
        %v1014 = vld [vmem:[%s1010 + $0x18] sm:$0xff]
        %v1015 = vld [vmem:[%s1010 + $0x20] sm:$0xff]
        %v1016 = vld [vmem:[%s1010 + $0x28] sm:$0xff]
        %v1017 = vld [vmem:[%s1010 + $0x30] sm:$0xff]
        %v1018 = vld [vmem:[%s1010 + $0x38] sm:$0xff]
        %v1019 = vld [vmem:[%s1010 + $0x40] sm:$0xff]
        %v1020 = vld [vmem:[%s1010 + $0x48] sm:$0xff]
        %v1021 = vld [vmem:[%s1010 + $0x50] sm:$0xff]
        %v1022 = vld [vmem:[%s1010 + $0x58] sm:$0xff]
        %v1023 = vld [vmem:[%s1010 + $0x60] sm:$0xff]
        %v1024 = vld [vmem:[%s1010 + $0x68] sm:$0xff]
        %v1025 = vld [vmem:[%s1010 + $0x70] sm:$0xff]
        %v1026 = vld [vmem:[%s1010 + $0x78] sm:$0xff]
        %1027 = vmatprep.subr.mxu0 0.0
        %1028 = vmatpush1.msra.mxu0 %v1011
        %1029 = vmatprep.subr.mxu0 0.0
        %1030 = vmatpush1.msra.mxu0 %v1012
        %1031 = vmatprep.subr.mxu0 0.0
        %1032 = vmatpush1.msra.mxu0 %v1013
        %1033 = vmatprep.subr.mxu0 0.0
        %1034 = vmatpush1.msra.mxu0 %v1014
        %1035 = vmatprep.subr.mxu0 0.0
        %1036 = vmatpush1.msra.mxu0 %v1015
        %1037 = vmatprep.subr.mxu0 0.0
        %1038 = vmatpush1.msra.mxu0 %v1016
        %1039 = vmatprep.subr.mxu0 0.0
        %1040 = vmatpush1.msra.mxu0 %v1017
        %1041 = vmatprep.subr.mxu0 0.0
        %1042 = vmatpush1.msra.mxu0 %v1018
        %1043 = vmatprep.subr.mxu0 0.0
        %1044 = vmatpush1.msra.mxu0 %v1019
        %1045 = vmatprep.subr.mxu0 0.0
        %1046 = vmatpush1.msra.mxu0 %v1020
        %1047 = vmatprep.subr.mxu0 0.0
        %1048 = vmatpush1.msra.mxu0 %v1021
        %1049 = vmatprep.subr.mxu0 0.0
        %1050 = vmatpush1.msra.mxu0 %v1022
        %1051 = vmatprep.subr.mxu0 0.0
        %1052 = vmatpush1.msra.mxu0 %v1023
        %1053 = vmatprep.subr.mxu0 0.0
        %1054 = vmatpush1.msra.mxu0 %v1024
        %1055 = vmatprep.subr.mxu0 0.0
        %1056 = vmatpush1.msra.mxu0 %v1025
        %1057 = vmatprep.subr.mxu0 0.0
        %1058 = vmatpush1.msra.mxu0 %v1026
        %1059 = vmatprep.subr.mxu0 0.0
        %1060 = vmatpush1.msra.mxu0 0.0
        %1061 = vmatprep.subr.mxu0 0.0
        %1062 = vmatpush1.msra.mxu0 0.0
        %1063 = vmatprep.subr.mxu0 0.0
        %1064 = vmatpush1.msra.mxu0 0.0
        %1065 = vmatprep.subr.mxu0 0.0
        %1066 = vmatpush1.msra.mxu0 0.0
        %1067 = vmatprep.subr.mxu0 0.0
        %1068 = vmatpush1.msra.mxu0 0.0
        %1069 = vmatprep.subr.mxu0 0.0
        %1070 = vmatpush1.msra.mxu0 0.0
        %1071 = vmatprep.subr.mxu0 0.0
        %1072 = vmatpush1.msra.mxu0 0.0
        %1073 = vmatprep.subr.mxu0 0.0
        %1074 = vmatpush1.msra.mxu0 0.0
        %1075 = vmatprep.subr.mxu0 0.0
        %1076 = vmatpush1.msra.mxu0 0.0
        %1077 = vmatprep.subr.mxu0 0.0
        %1078 = vmatpush1.msra.mxu0 0.0
        %1079 = vmatprep.subr.mxu0 0.0
        %1080 = vmatpush1.msra.mxu0 0.0
        %1081 = vmatprep.subr.mxu0 0.0
        %1082 = vmatpush1.msra.mxu0 0.0
        %1083 = vmatprep.subr.mxu0 0.0
        %1084 = vmatpush1.msra.mxu0 0.0
        %1085 = vmatprep.subr.mxu0 0.0
        %1086 = vmatpush1.msra.mxu0 0.0
        %1087 = vmatprep.subr.mxu0 0.0
        %1088 = vmatpush1.msra.mxu0 0.0
        %1089 = vmatprep.subr.mxu0 0.0
        %1090 = vmatpush1.msra.mxu0 0.0
        %1091 = vmatprep.mubr.f32.mxu0 0.0
        %1092 = vmatmul.mubr.f32.gmra.mrb[0].mxu0 %v1004
        %v1093 = vpop.f32.mrb[0].mxu0
        %v1094 = vadd.f32 0.0, %v1093
        %v1095 = vpop.f32.mrb[0].mxu0
        %1096 = vmatprep.mubr.f32.mxu0 0.0
        %1097 = vmatmul.mubr.f32.gmra.mrb[0].mxu0 %v1005
        %v1098 = vpop.f32.mrb[0].mxu0
        %v1099 = vadd.f32 0.0, %v1098
        %v1100 = vpop.f32.mrb[0].mxu0
        %1101 = vmatprep.mubr.f32.mxu0 0.0
        %1102 = vmatmul.mubr.f32.gmra.mrb[0].mxu0 %v1006
        %v1103 = vpop.f32.mrb[0].mxu0
        %v1104 = vpop.f32.mrb[0].mxu0
        %1105 = vmatprep.mubr.f32.mxu0 0.0
        %1106 = vmatmul.mubr.f32.gmra.mrb[0].mxu0 %v1007
        %v1107 = vpop.f32.mrb[0].mxu0
        %v1108 = vadd.f32 0.0, %v1107
        %v1109 = vpop.f32.mrb[0].mxu0
        %1110 = vmatprep.mubr.f32.mxu0 0.0
        %1111 = vmatmul.mubr.f32.gmra.mrb[0].mxu0 %v1008
        %v1112 = vpop.f32.mrb[0].mxu0
        %v1113 = vadd.f32 0.0, %v1112
        %v1114 = vpop.f32.mrb[0].mxu0
        %1115 = vmatprep.mubr.f32.mxu0 0.0
        %1116 = vmatmul.mubr.f32.gmra.mrb[0].mxu0 %v1009
        %v1117 = vpop.f32.mrb[0].mxu0
        %v1118 = vpop.f32.mrb[0].mxu0
        %1119 = vdwg.mxu0
        %v1120 = vadd.f32 %v978, %v1094
        %v1121 = vadd.f32 %v983, %v1099
        %v1122 = vadd.f32 %v992, %v1108
        %v1123 = vadd.f32 %v997, %v1113
        %v1124 = vld [vmem:[%s4] sm:$0x1]
        %v1126 = vlaneseq
        %v1127 = vshrl.u32 %v1126, 7
        %v1128 = vsub.s32 0, %v1127
        %v1129 = vrot.slane %v1124, %v1128
        %v1131 = vadd.f32 %v1120, %v1129
        %v1132 = vadd.f32 %v1121, %v1129
        %v1133 = vadd.f32 %v1122, %v1129
        %v1134 = vadd.f32 %v1123, %v1129
        %v1135 = vmax.f32 %v1131, 0.0
        %v1136 = vmax.f32 %v1132, 0.0
        %v1137 = vmax.f32 %v1133, 0.0
        %v1138 = vmax.f32 %v1134, 0.0
        %1139 = vst [vmem:[%s272] sm:$0xff] %v1135
        %1140 = vst [vmem:[%s272 + $0x8] sm:$0xff] %v1136
        %s1141 = scalar_lea.vmem %s272, 16 [#allocation10]
        %1142 = vst [vmem:[%s1141] sm:$0xff] %v1137
        %1143 = vst [vmem:[%s1141 + $0x8] sm:$0xff] %v1138
        %s1144 = sand.u32 %s141, 1
        %s1145 = scalar_lea.sflag [#allocation6], %s1144
        %s1146 = sand.u32 %s141, 1
        %s1147 = smul.addr %s1146, 32
        %s1148 = scalar_lea.vmem [#allocation10], %s1147
        // Predicated region
        $region53: #{tpu_custom_call.1} parent=39 // pred_check
          %p1149 = pneg %p151
        $region54: #{tpu_custom_call.1} parent=39 // pred_check_branch
          %1151 = sbr.rel (%p1149) target = $region56
        $region55: #{tpu_custom_call.1} parent=39 // pred_region
          %s1152 = smul.u32 2, %s23
          %s1154 = ssub.s32 512, 512
          %1155 = vsyncadd %s1145, %s1154
          %s1156 = smul.addr %s1152, 2
          %s1157 = smul.addr %s1156, 128
          %s1158 = scalar_lea.hbm %s5, %s1157
          %s1159 = sshll.u32 %s1148, 4
          %s1160 = int_to_ptr.vmem [resolvable:$true] %s1159
          %1165 = dma.vmem_to_hbm [thread:$0]  %s1160, 512, %s1158, %s1145, 128, 128, 8
        $region56: #{tpu_custom_call.1} parent=39 // pred_fallthru
          _
      $region40: #{tpu_custom_call.1} parent=5 // pred_fallthru
        _
      %p1166 = scmp.le.s32.totalorder 2, %s18
      // Predicated region
      $region57: #{tpu_custom_call.1} parent=5 // pred_check
        %p1167 = pneg %p1166
      $region58: #{tpu_custom_call.1} parent=5 // pred_check_branch
        %1169 = sbr.rel (%p1167) target = $region60
      $region59: #{tpu_custom_call.1} parent=5 // pred_region
        %s1170 = ssub.s32 %s18, 2
        // Predicated region
        $region61: #{tpu_custom_call.1} parent=59 // pred_check
          %p1171 = pneg %p157
        $region62: #{tpu_custom_call.1} parent=59 // pred_check_branch
          %1173 = sbr.rel (%p1171) target = $region64
        $region63: #{tpu_custom_call.1} parent=59 // pred_region
          %s1174 = sand.u32 %s142, 1
          %s1175 = scalar_lea.sflag [#allocation6], %s1174
          %s1176 = sand.u32 %s142, 1
          %s1177 = smul.addr %s1176, 32
          %s1178 = scalar_lea.vmem [#allocation10], %s1177
          %1179 = dma.done %s1175, 512
        $region64: #{tpu_custom_call.1} parent=59 // pred_fallthru
          _
      $region60: #{tpu_custom_call.1} parent=5 // pred_fallthru
        _
    $region6: #{tpu_custom_call.1} parent=1 // loop_footer
      %s22 = sadd.s32 1, %s18
    $region7: #{tpu_custom_call.1} parent=1 // loop_footer_branch
      %17 = sbr.rel target = $region3
    $region8: #{tpu_custom_call.1} parent=1 // loop_exit
      _
    %1180 = vsyncpa [#allocation5], 1
    %s1181 = scalar_lea.sflag [#allocation5], 1
    %1182 = vsyncpa %s1181, 1
    %1183 = vsyncpa [#allocation8], 1
    %1184 = vsyncpa [#allocation6], 1
    %s1185 = scalar_lea.sflag [#allocation6], 1
    %1186 = vsyncpa %s1185, 1

</llo_original>
